<compile_context>
chip_gen: v6e
topology: v6e:2x2x1
jax: 0.10.0
libtpu: 0.0.40
codegen_flags: <defaults>
</compile_context>

<pallas_src>
import jax
import jax.numpy as jnp
from jax.experimental import pallas as pl
from jax.experimental.pallas import tpu as pltpu


# ----------------------------- configuration -----------------------------
B = 2          # batch
L = 8          # sequence length (tokens per sentence)
E = 16         # embedding dim (pretrained_emb.shape[1])
C = 32         # configs['conv_dim']
H = 32         # configs['mlp_hidden']
LABELS = 3     # label_size
VOCAB = 20     # token_size

NSENT = 2 * B          # premise + hypothesis sentences
NROWS = NSENT * L      # rows of the flattened activation slab


# ------------------------------ fused kernel ------------------------------
def _nlinet_kernel(x_ref, w1_ref, b1_ref, w2_ref, b2_ref,
                   whb_ref, bh_ref, wo_ref, bo_ref, out_ref):
    """Whole NLINet forward for one batch in a single block.

    x_ref  : (NROWS, E)   flattened embedded sentences, channels last;
                          rows [0, B*L) = premise, rows [B*L, 2B*L) = hypothesis
    w1_ref : (3E, C)      conv1 im2col weights, row blocks = taps [l-1, l, l+1]
    b1_ref : (1, C)
    w2_ref : (3C, C)      conv2 im2col weights
    b2_ref : (1, C)
    whb_ref: (8, C, H)    hidden Linear weight (W.T) split into 8 row blocks
    bh_ref : (1, H)
    wo_ref : (H, LABELS)
    bo_ref : (1, LABELS)
    out_ref: (B, LABELS)  log-probabilities
    """
    x = x_ref[...]                                           # (NROWS, E)

    # Position of each row inside its sentence -> masks for boundary taps.
    row = jax.lax.broadcasted_iota(jnp.int32, (NROWS, 1), 0)
    pos = row % L
    not_first = pos != 0          # tap x[l-1] is zero padding at l == 0
    not_last = pos != (L - 1)     # tap x[l+1] is zero padding at l == L-1

    def conv3_relu(inp, w_ref, b_ref):
        # 'same'-padded kernel-size-3 conv as a single im2col matmul.
        prev_ = jnp.where(not_first, pltpu.roll(inp, shift=1, axis=0), 0.0)
        next_ = jnp.where(not_last, pltpu.roll(inp, shift=NROWS - 1, axis=0), 0.0)
        taps = jnp.concatenate([prev_, inp, next_], axis=1)  # (NROWS, 3*Cin)
        y = jnp.dot(taps, w_ref[...], preferred_element_type=jnp.float32)
        return jnp.maximum(y + b_ref[...], 0.0)

    h1 = conv3_relu(x, w1_ref, b1_ref)                       # (NROWS, C)
    h2 = conv3_relu(h1, w2_ref, b2_ref)                      # (NROWS, C)

    # Max-pool over the sequence dimension of every sentence.
    pool1 = jnp.max(h1.reshape(NSENT, L, C), axis=1)         # (2B, C)
    pool2 = jnp.max(h2.reshape(NSENT, L, C), axis=1)         # (2B, C)

    p1u, p1v = pool1[:B], pool1[B:]                          # premise / hypothesis
    p2u, p2v = pool2[:B], pool2[B:]

    # Head features [u, v, |u-v|, u*v] (8C lanes) folded into 8 accumulating
    # matmuls against the pre-split hidden weight -- no lane concatenation.
    def fdot(a, k):
        return jnp.dot(a, whb_ref[k], preferred_element_type=jnp.float32)

    hid = (fdot(p1u, 0) + fdot(p2u, 1)                                    # u
           + fdot(p1v, 2) + fdot(p2v, 3)                                  # v
           + fdot(jnp.abs(p1u - p1v), 4) + fdot(jnp.abs(p2u - p2v), 5)    # |u-v|
           + fdot(p1u * p1v, 6) + fdot(p2u * p2v, 7)                      # u*v
           + bh_ref[...])
    # Dropout(p=0.1) is identity at inference time.
    hid = jnp.maximum(hid, 0.0)                              # (B, H)

    logits = (jnp.dot(hid, wo_ref[...], preferred_element_type=jnp.float32)
              + bo_ref[...])                                 # (B, LABELS)

    z = logits - jnp.max(logits, axis=1, keepdims=True)
    lse = jnp.log(jnp.sum(jnp.exp(z), axis=1, keepdims=True))
    out_ref[...] = z - lse


def _nlinet_pallas(xs, params):
    vmem = lambda: pl.BlockSpec(memory_space=pltpu.MemorySpace.VMEM)
    return pl.pallas_call(
        _nlinet_kernel,
        out_shape=jax.ShapeDtypeStruct((B, LABELS), jnp.float32),
        in_specs=[vmem() for _ in range(9)],
        out_specs=vmem(),
    )(xs, params["w1"], params["b1"], params["w2"], params["b2"],
      params["whb"], params["bh"], params["wo"], params["bo"])


# ------------------------------ full model -------------------------------
@jax.jit
def nlinet_forward(premise_tok, hypothesis_tok, params):
    emb_table = params["emb"]
    # Frozen pretrained embedding lookup (gather) stays in plain JAX.
    prem_x = jnp.take(emb_table, premise_tok, axis=0)        # (B, L, E)
    hyp_x = jnp.take(emb_table, hypothesis_tok, axis=0)      # (B, L, E)
    xs = jnp.concatenate([prem_x, hyp_x], axis=0).reshape(NROWS, E)
    return _nlinet_pallas(xs, params)


def init_params(key):
    ks = jax.random.split(key, 8)
    scale = 0.1
    emb = jax.random.normal(ks[0], (VOCAB, E), jnp.float32)

    # Conv1d weights in PyTorch layout (out, in, k=3), re-packed host-side to
    # im2col layout (3*in, out); tap order [x[l-1], x[l], x[l+1]] = k 0,1,2.
    w1_t = scale * jax.random.normal(ks[1], (C, E, 3), jnp.float32)
    b1 = scale * jax.random.normal(ks[2], (C,), jnp.float32)
    w2_t = scale * jax.random.normal(ks[3], (C, C, 3), jnp.float32)
    b2 = scale * jax.random.normal(ks[4], (C,), jnp.float32)
    w1 = jnp.transpose(w1_t, (2, 1, 0)).reshape(3 * E, C)    # (3E, C)
    w2 = jnp.transpose(w2_t, (2, 1, 0)).reshape(3 * C, C)    # (3C, C)

    # Hidden Linear: PyTorch stores (H, 8C); transpose to (8C, H) and split
    # into 8 (C, H) row blocks matching the feature order
    # [pool1_u, pool2_u, pool1_v, pool2_v, |d1|, |d2|, m1, m2].
    wh_t = scale * jax.random.normal(ks[5], (H, 8 * C), jnp.float32)
    bh = scale * jax.random.normal(ks[6], (H,), jnp.float32)
    wo_t = scale * jax.random.normal(ks[7], (LABELS, H), jnp.float32)
    bo = jnp.zeros((LABELS,), jnp.float32)

    return {
        "emb": emb,
        "w1": w1, "b1": b1.reshape(1, C),
        "w2": w2, "b2": b2.reshape(1, C),
        "whb": jnp.transpose(wh_t).reshape(8, C, H),          # (8, C, H)
        "bh": bh.reshape(1, H),
        "wo": jnp.transpose(wo_t),                            # (H, LABELS)
        "bo": bo.reshape(1, LABELS),
    }


if __name__ == "__main__":
    key = jax.random.PRNGKey(0)
    k_par, k_p, k_h = jax.random.split(key, 3)
    params = init_params(k_par)

    premise = jax.random.randint(k_p, (B, L), 0, VOCAB, dtype=jnp.int32)
    hypothesis = jax.random.randint(k_h, (B, L), 0, VOCAB, dtype=jnp.int32)

    log_probs = nlinet_forward(premise, hypothesis, params)
    jax.block_until_ready(log_probs)

    assert log_probs.shape == (B, LABELS)
    print("KERNEL_OK")
</pallas_src>

<mosaic_0001>
module attributes {stable_mosaic.version = 11 : i64} {
  func.func @_nlinet_kernel(%arg0: memref<32x16xf32, #tpu.memory_space<vmem>>, %arg1: memref<48x32xf32, #tpu.memory_space<vmem>>, %arg2: memref<1x32xf32, #tpu.memory_space<vmem>>, %arg3: memref<96x32xf32, #tpu.memory_space<vmem>>, %arg4: memref<1x32xf32, #tpu.memory_space<vmem>>, %arg5: memref<8x32x32xf32, #tpu.memory_space<vmem>>, %arg6: memref<1x32xf32, #tpu.memory_space<vmem>>, %arg7: memref<32x3xf32, #tpu.memory_space<vmem>>, %arg8: memref<1x3xf32, #tpu.memory_space<vmem>>, %arg9: memref<2x3xf32, #tpu.memory_space<vmem>>) attributes {dimension_semantics = [], scalar_prefetch = 0 : i64, scratch_operands = 0 : i64, tpu.core_type = #tpu.core_type<tc>} {
    %c0 = arith.constant 0 : index
    %c0_0 = arith.constant 0 : index
    %0 = vector.load %arg0[%c0, %c0_0] : memref<32x16xf32, #tpu.memory_space<vmem>>, vector<32x16xf32>
    %1 = tpu.iota {dimensions = array<i32: 0>} : vector<32x1xi32>
    %c8_i32 = arith.constant 8 : i32
    %c0_i32 = arith.constant 0 : i32
    %2 = arith.cmpi eq, %c8_i32, %c0_i32 : i32
    %c1_i32 = arith.constant 1 : i32
    %3 = arith.select %2, %c1_i32, %c8_i32 : i32
    %4 = vector.broadcast %3 : i32 to vector<32x1xi32>
    %5 = arith.remsi %1, %4 : vector<32x1xi32>
    %c0_i32_1 = arith.constant 0 : i32
    %6 = vector.broadcast %c0_i32_1 : i32 to vector<32x1xi32>
    %7 = arith.cmpi ne, %5, %6 : vector<32x1xi32>
    %c0_i32_2 = arith.constant 0 : i32
    %8 = vector.broadcast %c0_i32_2 : i32 to vector<32x1xi32>
    %9 = arith.cmpi slt, %5, %8 : vector<32x1xi32>
    %c0_i32_3 = arith.constant 0 : i32
    %10 = arith.cmpi slt, %3, %c0_i32_3 : i32
    %11 = vector.broadcast %10 : i1 to vector<32x1xi1>
    %12 = vector.broadcast %11 : vector<32x1xi1> to vector<32x1xi1>
    %13 = arith.xori %9, %12 : vector<32x1xi1>
    %14 = arith.andi %13, %7 : vector<32x1xi1>
    %15 = vector.broadcast %3 : i32 to vector<32x1xi32>
    %16 = arith.addi %5, %15 : vector<32x1xi32>
    %17 = arith.select %14, %16, %5 : vector<32x1xi1>, vector<32x1xi32>
    %c0_i32_4 = arith.constant 0 : i32
    %18 = vector.broadcast %c0_i32_4 : i32 to vector<32x1xi32>
    %19 = arith.cmpi ne, %17, %18 : vector<32x1xi32>
    %c7_i32 = arith.constant 7 : i32
    %20 = vector.broadcast %c7_i32 : i32 to vector<32x1xi32>
    %21 = arith.cmpi ne, %17, %20 : vector<32x1xi32>
    %c1_i32_5 = arith.constant 1 : i32
    %22 = tpu.dynamic_rotate %0 by %c1_i32_5 dim 0 : vector<32x16xf32>, i32 -> vector<32x16xf32>
    %cst = arith.constant 0.000000e+00 : f32
    %23 = vector.shape_cast %19 : vector<32x1xi1> to vector<32x1xi1>
    %24 = vector.broadcast %23 : vector<32x1xi1> to vector<32x16xi1>
    %25 = vector.broadcast %cst : f32 to vector<32x16xf32>
    %26 = arith.select %24, %22, %25 : vector<32x16xi1>, vector<32x16xf32>
    %c31_i32 = arith.constant 31 : i32
    %27 = tpu.dynamic_rotate %0 by %c31_i32 dim 0 : vector<32x16xf32>, i32 -> vector<32x16xf32>
    %cst_6 = arith.constant 0.000000e+00 : f32
    %28 = vector.shape_cast %21 : vector<32x1xi1> to vector<32x1xi1>
    %29 = vector.broadcast %28 : vector<32x1xi1> to vector<32x16xi1>
    %30 = vector.broadcast %cst_6 : f32 to vector<32x16xf32>
    %31 = arith.select %29, %27, %30 : vector<32x16xi1>, vector<32x16xf32>
    %32 = tpu.concatenate %26, %0, %31 in 1 : vector<32x16xf32>, vector<32x16xf32>, vector<32x16xf32> -> vector<32x48xf32>
    %c0_7 = arith.constant 0 : index
    %c0_8 = arith.constant 0 : index
    %33 = vector.load %arg1[%c0_7, %c0_8] : memref<48x32xf32, #tpu.memory_space<vmem>>, vector<48x32xf32>
    %cst_9 = arith.constant dense<0.000000e+00> : vector<32x32xf32>
    %34 = tpu.matmul %32, %33, %cst_9 {dimension_numbers = #tpu.dot_dimension_numbers<[1], [0], [0], [1], [0, 0, 1, 1], [], []>} : vector<32x48xf32>, vector<48x32xf32>, vector<32x32xf32> -> vector<32x32xf32>
    %c0_10 = arith.constant 0 : index
    %c0_11 = arith.constant 0 : index
    %35 = vector.load %arg2[%c0_10, %c0_11] : memref<1x32xf32, #tpu.memory_space<vmem>>, vector<1x32xf32>
    %36 = vector.broadcast %35 : vector<1x32xf32> to vector<32x32xf32>
    %37 = arith.addf %34, %36 : vector<32x32xf32>
    %cst_12 = arith.constant 0.000000e+00 : f32
    %38 = vector.broadcast %cst_12 : f32 to vector<32x32xf32>
    %39 = arith.maximumf %37, %38 : vector<32x32xf32>
    %c1_i32_13 = arith.constant 1 : i32
    %40 = tpu.dynamic_rotate %39 by %c1_i32_13 dim 0 : vector<32x32xf32>, i32 -> vector<32x32xf32>
    %cst_14 = arith.constant 0.000000e+00 : f32
    %41 = vector.shape_cast %19 : vector<32x1xi1> to vector<32x1xi1>
    %42 = vector.broadcast %41 : vector<32x1xi1> to vector<32x32xi1>
    %43 = vector.broadcast %cst_14 : f32 to vector<32x32xf32>
    %44 = arith.select %42, %40, %43 : vector<32x32xi1>, vector<32x32xf32>
    %c31_i32_15 = arith.constant 31 : i32
    %45 = tpu.dynamic_rotate %39 by %c31_i32_15 dim 0 : vector<32x32xf32>, i32 -> vector<32x32xf32>
    %cst_16 = arith.constant 0.000000e+00 : f32
    %46 = vector.shape_cast %21 : vector<32x1xi1> to vector<32x1xi1>
    %47 = vector.broadcast %46 : vector<32x1xi1> to vector<32x32xi1>
    %48 = vector.broadcast %cst_16 : f32 to vector<32x32xf32>
    %49 = arith.select %47, %45, %48 : vector<32x32xi1>, vector<32x32xf32>
    %50 = tpu.concatenate %44, %39, %49 in 1 : vector<32x32xf32>, vector<32x32xf32>, vector<32x32xf32> -> vector<32x96xf32>
    %c0_17 = arith.constant 0 : index
    %c0_18 = arith.constant 0 : index
    %51 = vector.load %arg3[%c0_17, %c0_18] : memref<96x32xf32, #tpu.memory_space<vmem>>, vector<96x32xf32>
    %cst_19 = arith.constant dense<0.000000e+00> : vector<32x32xf32>
    %52 = tpu.matmul %50, %51, %cst_19 {dimension_numbers = #tpu.dot_dimension_numbers<[1], [0], [0], [1], [0, 0, 1, 1], [], []>} : vector<32x96xf32>, vector<96x32xf32>, vector<32x32xf32> -> vector<32x32xf32>
    %c0_20 = arith.constant 0 : index
    %c0_21 = arith.constant 0 : index
    %53 = vector.load %arg4[%c0_20, %c0_21] : memref<1x32xf32, #tpu.memory_space<vmem>>, vector<1x32xf32>
    %54 = vector.broadcast %53 : vector<1x32xf32> to vector<32x32xf32>
    %55 = arith.addf %52, %54 : vector<32x32xf32>
    %cst_22 = arith.constant 0.000000e+00 : f32
    %56 = vector.broadcast %cst_22 : f32 to vector<32x32xf32>
    %57 = arith.maximumf %55, %56 : vector<32x32xf32>
    %58 = vector.shape_cast %39 : vector<32x32xf32> to vector<4x8x32xf32>
    %cst_23 = arith.constant dense<0xFF800000> : vector<4x32xf32>
    %59 = vector.multi_reduction <maximumf>, %58, %cst_23 [1] : vector<4x8x32xf32> to vector<4x32xf32>
    %60 = vector.shape_cast %57 : vector<32x32xf32> to vector<4x8x32xf32>
    %cst_24 = arith.constant dense<0xFF800000> : vector<4x32xf32>
    %61 = vector.multi_reduction <maximumf>, %60, %cst_24 [1] : vector<4x8x32xf32> to vector<4x32xf32>
    %62 = vector.extract_strided_slice %59 {offsets = [0, 0], sizes = [2, 32], strides = [1, 1]} : vector<4x32xf32> to vector<2x32xf32>
    %63 = vector.extract_strided_slice %59 {offsets = [2, 0], sizes = [2, 32], strides = [1, 1]} : vector<4x32xf32> to vector<2x32xf32>
    %64 = vector.extract_strided_slice %61 {offsets = [0, 0], sizes = [2, 32], strides = [1, 1]} : vector<4x32xf32> to vector<2x32xf32>
    %65 = vector.extract_strided_slice %61 {offsets = [2, 0], sizes = [2, 32], strides = [1, 1]} : vector<4x32xf32> to vector<2x32xf32>
    %c0_25 = arith.constant 0 : index
    %c0_26 = arith.constant 0 : index
    %c0_27 = arith.constant 0 : index
    %66 = vector.load %arg5[%c0_25, %c0_26, %c0_27] : memref<8x32x32xf32, #tpu.memory_space<vmem>>, vector<1x32x32xf32>
    %67 = vector.shape_cast %66 : vector<1x32x32xf32> to vector<32x32xf32>
    %cst_28 = arith.constant dense<0.000000e+00> : vector<2x32xf32>
    %68 = tpu.matmul %62, %67, %cst_28 {dimension_numbers = #tpu.dot_dimension_numbers<[1], [0], [0], [1], [0, 0, 1, 1], [], []>} : vector<2x32xf32>, vector<32x32xf32>, vector<2x32xf32> -> vector<2x32xf32>
    %c1 = arith.constant 1 : index
    %c0_29 = arith.constant 0 : index
    %c0_30 = arith.constant 0 : index
    %69 = vector.load %arg5[%c1, %c0_29, %c0_30] : memref<8x32x32xf32, #tpu.memory_space<vmem>>, vector<1x32x32xf32>
    %70 = vector.shape_cast %69 : vector<1x32x32xf32> to vector<32x32xf32>
    %cst_31 = arith.constant dense<0.000000e+00> : vector<2x32xf32>
    %71 = tpu.matmul %64, %70, %cst_31 {dimension_numbers = #tpu.dot_dimension_numbers<[1], [0], [0], [1], [0, 0, 1, 1], [], []>} : vector<2x32xf32>, vector<32x32xf32>, vector<2x32xf32> -> vector<2x32xf32>
    %72 = arith.addf %68, %71 : vector<2x32xf32>
    %c2 = arith.constant 2 : index
    %c0_32 = arith.constant 0 : index
    %c0_33 = arith.constant 0 : index
    %73 = vector.load %arg5[%c2, %c0_32, %c0_33] : memref<8x32x32xf32, #tpu.memory_space<vmem>>, vector<1x32x32xf32>
    %74 = vector.shape_cast %73 : vector<1x32x32xf32> to vector<32x32xf32>
    %cst_34 = arith.constant dense<0.000000e+00> : vector<2x32xf32>
    %75 = tpu.matmul %63, %74, %cst_34 {dimension_numbers = #tpu.dot_dimension_numbers<[1], [0], [0], [1], [0, 0, 1, 1], [], []>} : vector<2x32xf32>, vector<32x32xf32>, vector<2x32xf32> -> vector<2x32xf32>
    %76 = arith.addf %72, %75 : vector<2x32xf32>
    %c3 = arith.constant 3 : index
    %c0_35 = arith.constant 0 : index
    %c0_36 = arith.constant 0 : index
    %77 = vector.load %arg5[%c3, %c0_35, %c0_36] : memref<8x32x32xf32, #tpu.memory_space<vmem>>, vector<1x32x32xf32>
    %78 = vector.shape_cast %77 : vector<1x32x32xf32> to vector<32x32xf32>
    %cst_37 = arith.constant dense<0.000000e+00> : vector<2x32xf32>
    %79 = tpu.matmul %65, %78, %cst_37 {dimension_numbers = #tpu.dot_dimension_numbers<[1], [0], [0], [1], [0, 0, 1, 1], [], []>} : vector<2x32xf32>, vector<32x32xf32>, vector<2x32xf32> -> vector<2x32xf32>
    %80 = arith.addf %76, %79 : vector<2x32xf32>
    %81 = arith.subf %62, %63 : vector<2x32xf32>
    %82 = math.absf %81 : vector<2x32xf32>
    %c4 = arith.constant 4 : index
    %c0_38 = arith.constant 0 : index
    %c0_39 = arith.constant 0 : index
    %83 = vector.load %arg5[%c4, %c0_38, %c0_39] : memref<8x32x32xf32, #tpu.memory_space<vmem>>, vector<1x32x32xf32>
    %84 = vector.shape_cast %83 : vector<1x32x32xf32> to vector<32x32xf32>
    %cst_40 = arith.constant dense<0.000000e+00> : vector<2x32xf32>
    %85 = tpu.matmul %82, %84, %cst_40 {dimension_numbers = #tpu.dot_dimension_numbers<[1], [0], [0], [1], [0, 0, 1, 1], [], []>} : vector<2x32xf32>, vector<32x32xf32>, vector<2x32xf32> -> vector<2x32xf32>
    %86 = arith.addf %80, %85 : vector<2x32xf32>
    %87 = arith.subf %64, %65 : vector<2x32xf32>
    %88 = math.absf %87 : vector<2x32xf32>
    %c5 = arith.constant 5 : index
    %c0_41 = arith.constant 0 : index
    %c0_42 = arith.constant 0 : index
    %89 = vector.load %arg5[%c5, %c0_41, %c0_42] : memref<8x32x32xf32, #tpu.memory_space<vmem>>, vector<1x32x32xf32>
    %90 = vector.shape_cast %89 : vector<1x32x32xf32> to vector<32x32xf32>
    %cst_43 = arith.constant dense<0.000000e+00> : vector<2x32xf32>
    %91 = tpu.matmul %88, %90, %cst_43 {dimension_numbers = #tpu.dot_dimension_numbers<[1], [0], [0], [1], [0, 0, 1, 1], [], []>} : vector<2x32xf32>, vector<32x32xf32>, vector<2x32xf32> -> vector<2x32xf32>
    %92 = arith.addf %86, %91 : vector<2x32xf32>
    %93 = arith.mulf %62, %63 : vector<2x32xf32>
    %c6 = arith.constant 6 : index
    %c0_44 = arith.constant 0 : index
    %c0_45 = arith.constant 0 : index
    %94 = vector.load %arg5[%c6, %c0_44, %c0_45] : memref<8x32x32xf32, #tpu.memory_space<vmem>>, vector<1x32x32xf32>
    %95 = vector.shape_cast %94 : vector<1x32x32xf32> to vector<32x32xf32>
    %cst_46 = arith.constant dense<0.000000e+00> : vector<2x32xf32>
    %96 = tpu.matmul %93, %95, %cst_46 {dimension_numbers = #tpu.dot_dimension_numbers<[1], [0], [0], [1], [0, 0, 1, 1], [], []>} : vector<2x32xf32>, vector<32x32xf32>, vector<2x32xf32> -> vector<2x32xf32>
    %97 = arith.addf %92, %96 : vector<2x32xf32>
    %98 = arith.mulf %64, %65 : vector<2x32xf32>
    %c7 = arith.constant 7 : index
    %c0_47 = arith.constant 0 : index
    %c0_48 = arith.constant 0 : index
    %99 = vector.load %arg5[%c7, %c0_47, %c0_48] : memref<8x32x32xf32, #tpu.memory_space<vmem>>, vector<1x32x32xf32>
    %100 = vector.shape_cast %99 : vector<1x32x32xf32> to vector<32x32xf32>
    %cst_49 = arith.constant dense<0.000000e+00> : vector<2x32xf32>
    %101 = tpu.matmul %98, %100, %cst_49 {dimension_numbers = #tpu.dot_dimension_numbers<[1], [0], [0], [1], [0, 0, 1, 1], [], []>} : vector<2x32xf32>, vector<32x32xf32>, vector<2x32xf32> -> vector<2x32xf32>
    %102 = arith.addf %97, %101 : vector<2x32xf32>
    %c0_50 = arith.constant 0 : index
    %c0_51 = arith.constant 0 : index
    %103 = vector.load %arg6[%c0_50, %c0_51] : memref<1x32xf32, #tpu.memory_space<vmem>>, vector<1x32xf32>
    %104 = vector.broadcast %103 : vector<1x32xf32> to vector<2x32xf32>
    %105 = arith.addf %102, %104 : vector<2x32xf32>
    %cst_52 = arith.constant 0.000000e+00 : f32
    %106 = vector.broadcast %cst_52 : f32 to vector<2x32xf32>
    %107 = arith.maximumf %105, %106 : vector<2x32xf32>
    %c0_53 = arith.constant 0 : index
    %c0_54 = arith.constant 0 : index
    %108 = vector.load %arg7[%c0_53, %c0_54] : memref<32x3xf32, #tpu.memory_space<vmem>>, vector<32x3xf32>
    %cst_55 = arith.constant dense<0.000000e+00> : vector<2x3xf32>
    %109 = tpu.matmul %107, %108, %cst_55 {dimension_numbers = #tpu.dot_dimension_numbers<[1], [0], [0], [1], [0, 0, 1, 1], [], []>} : vector<2x32xf32>, vector<32x3xf32>, vector<2x3xf32> -> vector<2x3xf32>
    %c0_56 = arith.constant 0 : index
    %c0_57 = arith.constant 0 : index
    %110 = vector.load %arg8[%c0_56, %c0_57] : memref<1x3xf32, #tpu.memory_space<vmem>>, vector<1x3xf32>
    %111 = vector.broadcast %110 : vector<1x3xf32> to vector<2x3xf32>
    %112 = arith.addf %109, %111 : vector<2x3xf32>
    %cst_58 = arith.constant dense<0xFF800000> : vector<2xf32>
    %113 = vector.multi_reduction <maximumf>, %112, %cst_58 [1] : vector<2x3xf32> to vector<2xf32>
    %114 = vector.shape_cast %113 : vector<2xf32> to vector<2x1xf32>
    %115 = vector.broadcast %114 : vector<2x1xf32> to vector<2x3xf32>
    %116 = arith.subf %112, %115 : vector<2x3xf32>
    %117 = math.exp %116 : vector<2x3xf32>
    %cst_59 = arith.constant dense<0.000000e+00> : vector<2xf32>
    %118 = vector.multi_reduction <add>, %117, %cst_59 [1] : vector<2x3xf32> to vector<2xf32>
    %119 = vector.shape_cast %118 : vector<2xf32> to vector<2x1xf32>
    %120 = math.log %119 : vector<2x1xf32>
    %121 = vector.broadcast %120 : vector<2x1xf32> to vector<2x3xf32>
    %122 = arith.subf %116, %121 : vector<2x3xf32>
    %c0_60 = arith.constant 0 : index
    %c0_61 = arith.constant 0 : index
    %123 = vector.load %arg9[%c0_60, %c0_61] : memref<2x3xf32, #tpu.memory_space<vmem>>, vector<2x3xf32>
    tpu.vector_store %arg9[%c0_60, %c0_61], %122 {strides = array<i32>} : memref<2x3xf32, #tpu.memory_space<vmem>>, vector<2x3xf32>,
    return
  }
}

</mosaic_0001>

<llo_original>
// kernel: nlinet_forward.1
$region0: #{nlinet_forward.1}
  #allocation0 [shape = 'u32[]', space=smem, size = 0x4, offset = 0x4, fixed_abs, tag = 'smem constant byte address 0x4 - core index']
  #allocation1 [shape = 'u32[144,128]{1,0:T(1,128)}', space=vmem, size = 0x12000, scoped, tag = 'internal scratch']
  %s0 = inlined_call_operand.vmem [shape: f32[32,16], index: 0, kind: input, shape index: {}]
  %s1 = inlined_call_operand.vmem [shape: f32[48,32], index: 1, kind: input, shape index: {}]
  %s2 = inlined_call_operand.vmem [shape: f32[1,32], index: 2, kind: input, shape index: {}]
  %s3 = inlined_call_operand.vmem [shape: f32[96,32], index: 3, kind: input, shape index: {}]
  %s4 = inlined_call_operand.vmem [shape: f32[1,32], index: 4, kind: input, shape index: {}]
  %s5 = inlined_call_operand.vmem [shape: f32[8,32,32], index: 5, kind: input, shape index: {}]
  %s6 = inlined_call_operand.vmem [shape: f32[1,32], index: 6, kind: input, shape index: {}]
  %s7 = inlined_call_operand.vmem [shape: f32[32,3], index: 7, kind: input, shape index: {}]
  %s8 = inlined_call_operand.vmem [shape: f32[1,3], index: 8, kind: input, shape index: {}]
  %s9 = inlined_call_operand.hbm [shape: f32[2,3], index: 9, kind: output, shape index: {}]
  %s10 = sld [smem:[#allocation0]]
  $region46: #{nlinet_forward.1} parent=0
    _
  %s12 = ssub.s32 1, %s10
  %s13 = scalar_select 0, %s12, %s10
  $region1: #{nlinet_forward.1} parent=0
    #allocation2 [shape = 'u8[1024]{0}', space=vmem, size = 0x400, scoped, tag = 'output window, operand 0, single buffered']
    #allocation3 [shape = 's32[1]{0}', space=sflag, size = 0x4, scoped, tag = 'scoped memory for nlinet_forward.1']
    %14 = vsyncpa [#allocation3], 0
    // Predicated region
    $region2: #{nlinet_forward.1} parent=1 // pred_check
      _
    $region3: #{nlinet_forward.1} parent=1 // pred_check_branch
      %16 = sbr.rel (0) target = $region5
    $region4: #{nlinet_forward.1} parent=1 // pred_region
      _
    $region5: #{nlinet_forward.1} parent=1 // pred_fallthru
      _
    // Predicated region
    $region6: #{nlinet_forward.1} parent=1 // pred_check
      _
    $region7: #{nlinet_forward.1} parent=1 // pred_check_branch
      %18 = sbr.rel (0) target = $region9
    $region8: #{nlinet_forward.1} parent=1 // pred_region
      _
    $region9: #{nlinet_forward.1} parent=1 // pred_fallthru
      _
    // Predicated region
    $region10: #{nlinet_forward.1} parent=1 // pred_check
      _
    $region11: #{nlinet_forward.1} parent=1 // pred_check_branch
      %20 = sbr.rel (0) target = $region13
    $region12: #{nlinet_forward.1} parent=1 // pred_region
      _
    $region13: #{nlinet_forward.1} parent=1 // pred_fallthru
      _
    // Predicated region
    $region14: #{nlinet_forward.1} parent=1 // pred_check
      _
    $region15: #{nlinet_forward.1} parent=1 // pred_check_branch
      %22 = sbr.rel (0) target = $region17
    $region16: #{nlinet_forward.1} parent=1 // pred_region
      _
    $region17: #{nlinet_forward.1} parent=1 // pred_fallthru
      _
    // Predicated region
    $region18: #{nlinet_forward.1} parent=1 // pred_check
      _
    $region19: #{nlinet_forward.1} parent=1 // pred_check_branch
      %24 = sbr.rel (0) target = $region21
    $region20: #{nlinet_forward.1} parent=1 // pred_region
      _
    $region21: #{nlinet_forward.1} parent=1 // pred_fallthru
      _
    // Predicated region
    $region22: #{nlinet_forward.1} parent=1 // pred_check
      _
    $region23: #{nlinet_forward.1} parent=1 // pred_check_branch
      %26 = sbr.rel (0) target = $region25
    $region24: #{nlinet_forward.1} parent=1 // pred_region
      _
    $region25: #{nlinet_forward.1} parent=1 // pred_fallthru
      _
    // Predicated region
    $region26: #{nlinet_forward.1} parent=1 // pred_check
      _
    $region27: #{nlinet_forward.1} parent=1 // pred_check_branch
      %28 = sbr.rel (0) target = $region29
    $region28: #{nlinet_forward.1} parent=1 // pred_region
      _
    $region29: #{nlinet_forward.1} parent=1 // pred_fallthru
      _
    // Predicated region
    $region30: #{nlinet_forward.1} parent=1 // pred_check
      _
    $region31: #{nlinet_forward.1} parent=1 // pred_check_branch
      %30 = sbr.rel (0) target = $region33
    $region32: #{nlinet_forward.1} parent=1 // pred_region
      _
    $region33: #{nlinet_forward.1} parent=1 // pred_fallthru
      _
    // Predicated region
    $region34: #{nlinet_forward.1} parent=1 // pred_check
      _
    $region35: #{nlinet_forward.1} parent=1 // pred_check_branch
      %32 = sbr.rel (0) target = $region37
    $region36: #{nlinet_forward.1} parent=1 // pred_region
      _
    $region37: #{nlinet_forward.1} parent=1 // pred_fallthru
      _
    %v33 = vld [vmem:[%s0] sm:$0xff]
    %v34 = vld [vmem:[%s0 + $0x8] sm:$0xff]
    %v35 = vld [vmem:[%s0 + $0x10] sm:$0xff]
    %v36 = vld [vmem:[%s0 + $0x18] sm:$0xff]
    %v37 = vlaneseq
    %v38 = vshrl.u32 %v37, 7
    %v39 = vadd.s32 %v38, 8
    %v40 = vadd.s32 %v38, 16
    %v41 = vadd.s32 %v38, 24
    %vm42 = vcmp.lt.s32.totalorder %v38, 0
    %v43 = vsub.s32 0, %v38
    %v44 = vsel %vm42, %v43, %v38
    %v45 = vshrl.u32 %v44, 3
    %v46 = vand.u32 %v44, 7
    %v47 = vsub.s32 0, %v46
    %v48 = vsel %vm42, %v47, %v46
    %vm49 = vcmp.lt.s32.totalorder %v39, 0
    %v50 = vsub.s32 0, %v39
    %v51 = vsel %vm49, %v50, %v39
    %v52 = vshrl.u32 %v51, 3
    %v53 = vand.u32 %v51, 7
    %v54 = vsub.s32 0, %v53
    %v55 = vsel %vm49, %v54, %v53
    %vm56 = vcmp.lt.s32.totalorder %v40, 0
    %v57 = vsub.s32 0, %v40
    %v58 = vsel %vm56, %v57, %v40
    %v59 = vshrl.u32 %v58, 3
    %v60 = vand.u32 %v58, 7
    %v61 = vsub.s32 0, %v60
    %v62 = vsel %vm56, %v61, %v60
    %vm63 = vcmp.lt.s32.totalorder %v41, 0
    %v64 = vsub.s32 0, %v41
    %v65 = vsel %vm63, %v64, %v41
    %v66 = vshrl.u32 %v65, 3
    %v67 = vand.u32 %v65, 7
    %v68 = vsub.s32 0, %v67
    %v69 = vsel %vm63, %v68, %v67
    %vm70 = vcmp.ne.s32.totalorder %v48, 0
    %vm71 = vcmp.ne.s32.totalorder %v55, 0
    %vm72 = vcmp.ne.s32.totalorder %v62, 0
    %vm73 = vcmp.ne.s32.totalorder %v69, 0
    %vm74 = vcmp.lt.s32.totalorder %v48, 0
    %vm75 = vcmp.lt.s32.totalorder %v55, 0
    %vm76 = vcmp.lt.s32.totalorder %v62, 0
    %vm77 = vcmp.lt.s32.totalorder %v69, 0
    %vm78 = vmand %vm74, %vm70
    %vm79 = vmand %vm75, %vm71
    %vm80 = vmand %vm76, %vm72
    %vm81 = vmand %vm77, %vm73
    %v82 = vadd.s32 %v48, 8
    %v83 = vadd.s32 %v55, 8
    %v84 = vadd.s32 %v62, 8
    %v85 = vadd.s32 %v69, 8
    %v86 = vsel %vm78, %v82, %v48
    %v87 = vsel %vm79, %v83, %v55
    %v88 = vsel %vm80, %v84, %v62
    %v89 = vsel %vm81, %v85, %v69
    %vm90 = vcmp.ne.s32.totalorder %v86, 0
    %vm91 = vcmp.ne.s32.totalorder %v87, 0
    %vm92 = vcmp.ne.s32.totalorder %v88, 0
    %vm93 = vcmp.ne.s32.totalorder %v89, 0
    %vm94 = vcmp.ne.s32.totalorder %v86, 7
    %vm95 = vcmp.ne.s32.totalorder %v87, 7
    %vm96 = vcmp.ne.s32.totalorder %v88, 7
    %vm97 = vcmp.ne.s32.totalorder %v89, 7
    %v98 = vrot.slane %v33, 7
    %v99 = vrot.slane %v34, 7
    %v100 = vrot.slane %v35, 7
    %v101 = vrot.slane %v36, 7
    %vm102 = vcmp.lt.s32.totalorder %v38, 1
    %v103 = vsel %vm102, %v100, %v101
    %v104 = vsel %vm102, %v99, %v100
    %v105 = vsel %vm102, %v98, %v99
    %v106 = vsel %vm102, %v101, %v98
    %v107 = vsel %vm90, 1, 0
    %v108 = vsel %vm91, 1, 0
    %v109 = vsel %vm92, 1, 0
    %v110 = vsel %vm93, 1, 0
    %vm111 = vcmp.eq.s32.totalorder %v107, 1
    %vm112 = vcmp.eq.s32.totalorder %v108, 1
    %vm113 = vcmp.eq.s32.totalorder %v109, 1
    %vm114 = vcmp.eq.s32.totalorder %v110, 1
    %v115 = vsel %vm111, %v106, 0.0
    %v116 = vsel %vm112, %v105, 0.0
    %v117 = vsel %vm113, %v104, 0.0
    %v118 = vsel %vm114, %v103, 0.0
    %v119 = vrot.slane %v33, 1
    %v120 = vrot.slane %v34, 1
    %v121 = vrot.slane %v35, 1
    %v122 = vrot.slane %v36, 1
    %vm123 = vcmp.lt.s32.totalorder %v38, 7
    %v124 = vsel %vm123, %v121, %v122
    %v125 = vsel %vm123, %v120, %v121
    %v126 = vsel %vm123, %v119, %v120
    %v127 = vsel %vm123, %v122, %v119
    %v128 = vsel %vm94, 1, 0
    %v129 = vsel %vm95, 1, 0
    %v130 = vsel %vm96, 1, 0
    %v131 = vsel %vm97, 1, 0
    %vm132 = vcmp.eq.s32.totalorder %v128, 1
    %vm133 = vcmp.eq.s32.totalorder %v129, 1
    %vm134 = vcmp.eq.s32.totalorder %v130, 1
    %vm135 = vcmp.eq.s32.totalorder %v131, 1
    %v136 = vsel %vm132, %v126, 0.0
    %v137 = vsel %vm133, %v125, 0.0
    %v138 = vsel %vm134, %v124, 0.0
    %v139 = vsel %vm135, %v127, 0.0
    %144 = vrot.lane.b32.xlu0 %v33, 16
    %v145 = vpop.permute.xlu0 %144
    %146 = vrot.lane.b32.xlu0 %v34, 16
    %v147 = vpop.permute.xlu0 %146
    %148 = vrot.lane.b32.xlu0 %v35, 16
    %v149 = vpop.permute.xlu0 %148
    %150 = vrot.lane.b32.xlu0 %v36, 16
    %v151 = vpop.permute.xlu0 %150
    %160 = vrot.lane.b32.xlu0 %v136, 32
    %v161 = vpop.permute.xlu0 %160
    %162 = vrot.lane.b32.xlu0 %v137, 32
    %v163 = vpop.permute.xlu0 %162
    %164 = vrot.lane.b32.xlu0 %v138, 32
    %v165 = vpop.permute.xlu0 %164
    %166 = vrot.lane.b32.xlu0 %v139, 32
    %v167 = vpop.permute.xlu0 %166
    %vm172 = vcmask 130048
    %v173 = vsel %vm172, %v115, %v145
    %v174 = vsel %vm172, %v116, %v147
    %v175 = vsel %vm172, %v117, %v149
    %v176 = vsel %vm172, %v118, %v151
    %vm177 = vcmask 261120
    %v178 = vsel %vm177, %v173, %v161
    %v179 = vsel %vm177, %v174, %v163
    %v180 = vsel %vm177, %v175, %v165
    %v181 = vsel %vm177, %v176, %v167
    %v182 = vld [vmem:[%s1] sm:$0xff]
    %v183 = vld [vmem:[%s1 + $0x8] sm:$0xff]
    %v184 = vld [vmem:[%s1 + $0x10] sm:$0xff]
    %v185 = vld [vmem:[%s1 + $0x18] sm:$0xff]
    %v186 = vld [vmem:[%s1 + $0x20] sm:$0xff]
    %v187 = vld [vmem:[%s1 + $0x28] sm:$0xff]
    %v188 = vld [vmem:[%s2] sm:$0x1]
    %v190 = vlaneseq
    %v191 = vshrl.u32 %v190, 7
    %v192 = vsub.s32 0, %v191
    %v193 = vrot.slane %v188, %v192
    %vm195 = vcmask 392192
    %v197 = vsel %vm195, %v178, 0
    %v200 = vsel %vm195, %v179, 0
    %v203 = vsel %vm195, %v180, 0
    %v206 = vsel %vm195, %v181, 0
    %208 = vmatprep.subr.mxu0 0.0
    %209 = vmatpush1.msra.mxu0 0.0
    %210 = vmatprep.subr.mxu0 0.0
    %211 = vmatpush1.msra.mxu0 0.0
    %212 = vmatprep.subr.mxu0 0.0
    %213 = vmatpush1.msra.mxu0 0.0
    %214 = vmatprep.subr.mxu0 0.0
    %215 = vmatpush1.msra.mxu0 0.0
    %216 = vmatprep.subr.mxu0 0.0
    %217 = vmatpush1.msra.mxu0 0.0
    %218 = vmatprep.subr.mxu0 0.0
    %219 = vmatpush1.msra.mxu0 0.0
    %220 = vmatprep.subr.mxu0 0.0
    %221 = vmatpush1.msra.mxu0 0.0
    %222 = vmatprep.subr.mxu0 0.0
    %223 = vmatpush1.msra.mxu0 0.0
    %224 = vmatprep.subr.mxu0 0.0
    %225 = vmatpush1.msra.mxu0 0.0
    %226 = vmatprep.subr.mxu0 0.0
    %227 = vmatpush1.msra.mxu0 0.0
    %228 = vmatprep.subr.mxu0 0.0
    %229 = vmatpush1.msra.mxu0 %v187
    %230 = vmatprep.subr.mxu0 0.0
    %231 = vmatpush1.msra.mxu0 %v186
    %232 = vmatprep.subr.mxu0 0.0
    %233 = vmatpush1.msra.mxu0 %v185
    %234 = vmatprep.subr.mxu0 0.0
    %235 = vmatpush1.msra.mxu0 %v184
    %236 = vmatprep.subr.mxu0 0.0
    %237 = vmatpush1.msra.mxu0 %v183
    %238 = vmatprep.subr.mxu0 0.0
    %239 = vmatpush1.msra.mxu0 %v182
    %240 = vmatprep.subr.mxu0 0.0
    %241 = vmatpush2.msra.mxu0 0.0
    %242 = vmatprep.subr.mxu0 0.0
    %243 = vmatpush2.msra.mxu0 0.0
    %244 = vmatprep.subr.mxu0 0.0
    %245 = vmatpush2.msra.mxu0 0.0
    %246 = vmatprep.subr.mxu0 0.0
    %247 = vmatpush2.msra.mxu0 0.0
    %248 = vmatprep.subr.mxu0 0.0
    %249 = vmatpush2.msra.mxu0 0.0
    %250 = vmatprep.subr.mxu0 0.0
    %251 = vmatpush2.msra.mxu0 0.0
    %252 = vmatprep.subr.mxu0 0.0
    %253 = vmatpush2.msra.mxu0 0.0
    %254 = vmatprep.subr.mxu0 0.0
    %255 = vmatpush2.msra.mxu0 0.0
    %256 = vmatprep.subr.mxu0 0.0
    %257 = vmatpush2.msra.mxu0 0.0
    %258 = vmatprep.subr.mxu0 0.0
    %259 = vmatpush2.msra.mxu0 0.0
    %260 = vmatprep.subr.mxu0 0.0
    %261 = vmatpush2.msra.mxu0 0.0
    %262 = vmatprep.subr.mxu0 0.0
    %263 = vmatpush2.msra.mxu0 0.0
    %264 = vmatprep.subr.mxu0 0.0
    %265 = vmatpush2.msra.mxu0 0.0
    %266 = vmatprep.subr.mxu0 0.0
    %267 = vmatpush2.msra.mxu0 0.0
    %268 = vmatprep.subr.mxu0 0.0
    %269 = vmatpush2.msra.mxu0 0.0
    %270 = vmatprep.subr.mxu0 0.0
    %271 = vmatpush2.msra.mxu0 0.0
    %272 = vmatprep.mubr.f32.mxu0 0.0
    %273 = vmatmul.mubr.f32.gmra.mxu0 %v197
    %v274 = vpop.f32.mrf.mxu0
    %v275 = vadd.f32 %v193, %v274
    %v276 = vpop.f32.mrf.mxu0
    %277 = vmatprep.mubr.f32.mxu0 0.0
    %278 = vmatmul.mubr.f32.gmra.mxu0 %v200
    %v279 = vpop.f32.mrf.mxu0
    %v280 = vadd.f32 %v193, %v279
    %v281 = vpop.f32.mrf.mxu0
    %282 = vmatprep.mubr.f32.mxu0 0.0
    %283 = vmatmul.mubr.f32.gmra.mxu0 %v203
    %v284 = vpop.f32.mrf.mxu0
    %v285 = vadd.f32 %v193, %v284
    %v286 = vpop.f32.mrf.mxu0
    %287 = vmatprep.mubr.f32.mxu0 0.0
    %288 = vmatmul.mubr.f32.gmra.mxu0 %v206
    %v289 = vpop.f32.mrf.mxu0
    %v290 = vadd.f32 %v193, %v289
    %v291 = vpop.f32.mrf.mxu0
    %292 = vdwg.mxu0
    %v293 = vmax.f32 %v275, 0.0
    %v294 = vmax.f32 %v280, 0.0
    %v295 = vmax.f32 %v285, 0.0
    %v296 = vmax.f32 %v290, 0.0
    %v297 = vrot.slane %v293, 7
    %v298 = vrot.slane %v294, 7
    %v299 = vrot.slane %v295, 7
    %v300 = vrot.slane %v296, 7
    %v301 = vsel %vm102, %v299, %v300
    %v302 = vsel %vm102, %v298, %v299
    %v303 = vsel %vm102, %v297, %v298
    %v304 = vsel %vm102, %v300, %v297
    %v305 = vsel %vm111, %v304, 0.0
    %v306 = vsel %vm112, %v303, 0.0
    %v307 = vsel %vm113, %v302, 0.0
    %v308 = vsel %vm114, %v301, 0.0
    %v309 = vrot.slane %v293, 1
    %v310 = vrot.slane %v294, 1
    %v311 = vrot.slane %v295, 1
    %v312 = vrot.slane %v296, 1
    %v313 = vsel %vm123, %v311, %v312
    %v314 = vsel %vm123, %v310, %v311
    %v315 = vsel %vm123, %v309, %v310
    %v316 = vsel %vm123, %v312, %v309
    %v317 = vsel %vm132, %v315, 0.0
    %v318 = vsel %vm133, %v314, 0.0
    %v319 = vsel %vm134, %v313, 0.0
    %v320 = vsel %vm135, %v316, 0.0
    %325 = vrot.lane.b32.xlu0 %v293, 32
    %v326 = vpop.permute.xlu0 %325
    %327 = vrot.lane.b32.xlu0 %v294, 32
    %v328 = vpop.permute.xlu0 %327
    %329 = vrot.lane.b32.xlu0 %v295, 32
    %v330 = vpop.permute.xlu0 %329
    %331 = vrot.lane.b32.xlu0 %v296, 32
    %v332 = vpop.permute.xlu0 %331
    %341 = vrot.lane.b32.xlu0 %v317, 64
    %v342 = vpop.permute.xlu0 %341
    %343 = vrot.lane.b32.xlu0 %v318, 64
    %v344 = vpop.permute.xlu0 %343
    %345 = vrot.lane.b32.xlu0 %v319, 64
    %v346 = vpop.permute.xlu0 %345
    %347 = vrot.lane.b32.xlu0 %v320, 64
    %v348 = vpop.permute.xlu0 %347
    %v353 = vsel %vm177, %v305, %v326
    %v354 = vsel %vm177, %v306, %v328
    %v355 = vsel %vm177, %v307, %v330
    %v356 = vsel %vm177, %v308, %v332
    %vm357 = vcmask 523264
    %v358 = vsel %vm357, %v353, %v342
    %v359 = vsel %vm357, %v354, %v344
    %v360 = vsel %vm357, %v355, %v346
    %v361 = vsel %vm357, %v356, %v348
    %v362 = vld [vmem:[%s3] sm:$0xff]
    %v363 = vld [vmem:[%s3 + $0x8] sm:$0xff]
    %v364 = vld [vmem:[%s3 + $0x10] sm:$0xff]
    %v365 = vld [vmem:[%s3 + $0x18] sm:$0xff]
    %v366 = vld [vmem:[%s3 + $0x20] sm:$0xff]
    %v367 = vld [vmem:[%s3 + $0x28] sm:$0xff]
    %v368 = vld [vmem:[%s3 + $0x30] sm:$0xff]
    %v369 = vld [vmem:[%s3 + $0x38] sm:$0xff]
    %v370 = vld [vmem:[%s3 + $0x40] sm:$0xff]
    %v371 = vld [vmem:[%s3 + $0x48] sm:$0xff]
    %v372 = vld [vmem:[%s3 + $0x50] sm:$0xff]
    %v373 = vld [vmem:[%s3 + $0x58] sm:$0xff]
    %v374 = vld [vmem:[%s4] sm:$0x1]
    %v376 = vlaneseq
    %v377 = vshrl.u32 %v376, 7
    %v378 = vsub.s32 0, %v377
    %v379 = vrot.slane %v374, %v378
    %vm381 = vcmask 785408
    %v383 = vsel %vm381, %v358, 0
    %v386 = vsel %vm381, %v359, 0
    %v389 = vsel %vm381, %v360, 0
    %v392 = vsel %vm381, %v361, 0
    %394 = vmatprep.subr.mxu0 0.0
    %395 = vmatpush1.msra.mxu0 0.0
    %396 = vmatprep.subr.mxu0 0.0
    %397 = vmatpush1.msra.mxu0 0.0
    %398 = vmatprep.subr.mxu0 0.0
    %399 = vmatpush1.msra.mxu0 0.0
    %400 = vmatprep.subr.mxu0 0.0
    %401 = vmatpush1.msra.mxu0 0.0
    %402 = vmatprep.subr.mxu0 0.0
    %403 = vmatpush1.msra.mxu0 %v373
    %404 = vmatprep.subr.mxu0 0.0
    %405 = vmatpush1.msra.mxu0 %v372
    %406 = vmatprep.subr.mxu0 0.0
    %407 = vmatpush1.msra.mxu0 %v371
    %408 = vmatprep.subr.mxu0 0.0
    %409 = vmatpush1.msra.mxu0 %v370
    %410 = vmatprep.subr.mxu0 0.0
    %411 = vmatpush1.msra.mxu0 %v369
    %412 = vmatprep.subr.mxu0 0.0
    %413 = vmatpush1.msra.mxu0 %v368
    %414 = vmatprep.subr.mxu0 0.0
    %415 = vmatpush1.msra.mxu0 %v367
    %416 = vmatprep.subr.mxu0 0.0
    %417 = vmatpush1.msra.mxu0 %v366
    %418 = vmatprep.subr.mxu0 0.0
    %419 = vmatpush1.msra.mxu0 %v365
    %420 = vmatprep.subr.mxu0 0.0
    %421 = vmatpush1.msra.mxu0 %v364
    %422 = vmatprep.subr.mxu0 0.0
    %423 = vmatpush1.msra.mxu0 %v363
    %424 = vmatprep.subr.mxu0 0.0
    %425 = vmatpush1.msra.mxu0 %v362
    %426 = vmatprep.subr.mxu0 0.0
    %427 = vmatpush2.msra.mxu0 0.0
    %428 = vmatprep.subr.mxu0 0.0
    %429 = vmatpush2.msra.mxu0 0.0
    %430 = vmatprep.subr.mxu0 0.0
    %431 = vmatpush2.msra.mxu0 0.0
    %432 = vmatprep.subr.mxu0 0.0
    %433 = vmatpush2.msra.mxu0 0.0
    %434 = vmatprep.subr.mxu0 0.0
    %435 = vmatpush2.msra.mxu0 0.0
    %436 = vmatprep.subr.mxu0 0.0
    %437 = vmatpush2.msra.mxu0 0.0
    %438 = vmatprep.subr.mxu0 0.0
    %439 = vmatpush2.msra.mxu0 0.0
    %440 = vmatprep.subr.mxu0 0.0
    %441 = vmatpush2.msra.mxu0 0.0
    %442 = vmatprep.subr.mxu0 0.0
    %443 = vmatpush2.msra.mxu0 0.0
    %444 = vmatprep.subr.mxu0 0.0
    %445 = vmatpush2.msra.mxu0 0.0
    %446 = vmatprep.subr.mxu0 0.0
    %447 = vmatpush2.msra.mxu0 0.0
    %448 = vmatprep.subr.mxu0 0.0
    %449 = vmatpush2.msra.mxu0 0.0
    %450 = vmatprep.subr.mxu0 0.0
    %451 = vmatpush2.msra.mxu0 0.0
    %452 = vmatprep.subr.mxu0 0.0
    %453 = vmatpush2.msra.mxu0 0.0
    %454 = vmatprep.subr.mxu0 0.0
    %455 = vmatpush2.msra.mxu0 0.0
    %456 = vmatprep.subr.mxu0 0.0
    %457 = vmatpush2.msra.mxu0 0.0
    %458 = vmatprep.mubr.f32.mxu0 0.0
    %459 = vmatmul.mubr.f32.gmra.mxu0 %v383
    %v460 = vpop.f32.mrf.mxu0
    %v461 = vadd.f32 %v379, %v460
    %v462 = vpop.f32.mrf.mxu0
    %463 = vmatprep.mubr.f32.mxu0 0.0
    %464 = vmatmul.mubr.f32.gmra.mxu0 %v386
    %v465 = vpop.f32.mrf.mxu0
    %v466 = vadd.f32 %v379, %v465
    %v467 = vpop.f32.mrf.mxu0
    %468 = vmatprep.mubr.f32.mxu0 0.0
    %469 = vmatmul.mubr.f32.gmra.mxu0 %v389
    %v470 = vpop.f32.mrf.mxu0
    %v471 = vadd.f32 %v379, %v470
    %v472 = vpop.f32.mrf.mxu0
    %473 = vmatprep.mubr.f32.mxu0 0.0
    %474 = vmatmul.mubr.f32.gmra.mxu0 %v392
    %v475 = vpop.f32.mrf.mxu0
    %v476 = vadd.f32 %v379, %v475
    %v477 = vpop.f32.mrf.mxu0
    %478 = vdwg.mxu0
    %v479 = vmax.f32 %v461, 0.0
    %v480 = vmax.f32 %v466, 0.0
    %v481 = vmax.f32 %v471, 0.0
    %v482 = vmax.f32 %v476, 0.0
    %v483 = vsel %vm177, %v293, -inf
    %v484 = vrot.slane %v483, 4
    %v485 = vmax.f32 %v483, %v484
    %v486 = vrot.slane %v485, 2
    %v487 = vmax.f32 %v485, %v486
    %v488 = vrot.slane %v487, 1
    %v489 = vmax.f32 %v487, %v488
    %v490 = vsel %vm177, %v294, -inf
    %v491 = vrot.slane %v490, 4
    %v492 = vmax.f32 %v490, %v491
    %v493 = vrot.slane %v492, 2
    %v494 = vmax.f32 %v492, %v493
    %v495 = vrot.slane %v494, 1
    %v496 = vmax.f32 %v494, %v495
    %v497 = vsel %vm177, %v295, -inf
    %v498 = vrot.slane %v497, 4
    %v499 = vmax.f32 %v497, %v498
    %v500 = vrot.slane %v499, 2
    %v501 = vmax.f32 %v499, %v500
    %v502 = vrot.slane %v501, 1
    %v503 = vmax.f32 %v501, %v502
    %v504 = vsel %vm177, %v296, -inf
    %v505 = vrot.slane %v504, 4
    %v506 = vmax.f32 %v504, %v505
    %v507 = vrot.slane %v506, 2
    %v508 = vmax.f32 %v506, %v507
    %v509 = vrot.slane %v508, 1
    %v510 = vmax.f32 %v508, %v509
    %v511 = vsel %vm177, %v479, -inf
    %v512 = vrot.slane %v511, 4
    %v513 = vmax.f32 %v511, %v512
    %v514 = vrot.slane %v513, 2
    %v515 = vmax.f32 %v513, %v514
    %v516 = vrot.slane %v515, 1
    %v517 = vmax.f32 %v515, %v516
    %v518 = vsel %vm177, %v480, -inf
    %v519 = vrot.slane %v518, 4
    %v520 = vmax.f32 %v518, %v519
    %v521 = vrot.slane %v520, 2
    %v522 = vmax.f32 %v520, %v521
    %v523 = vrot.slane %v522, 1
    %v524 = vmax.f32 %v522, %v523
    %v525 = vsel %vm177, %v481, -inf
    %v526 = vrot.slane %v525, 4
    %v527 = vmax.f32 %v525, %v526
    %v528 = vrot.slane %v527, 2
    %v529 = vmax.f32 %v527, %v528
    %v530 = vrot.slane %v529, 1
    %v531 = vmax.f32 %v529, %v530
    %v532 = vsel %vm177, %v482, -inf
    %v533 = vrot.slane %v532, 4
    %v534 = vmax.f32 %v532, %v533
    %v535 = vrot.slane %v534, 2
    %v536 = vmax.f32 %v534, %v535
    %v537 = vrot.slane %v536, 1
    %v538 = vmax.f32 %v536, %v537
    %v539 = vld [vmem:[%s5] sm:$0xff]
    %v540 = vld [vmem:[%s5 + $0x8] sm:$0xff]
    %v541 = vld [vmem:[%s5 + $0x10] sm:$0xff]
    %v542 = vld [vmem:[%s5 + $0x18] sm:$0xff]
    %s543 = scalar_lea.vmem %s5, 32
    %v544 = vld [vmem:[%s543] sm:$0xff]
    %v545 = vld [vmem:[%s543 + $0x8] sm:$0xff]
    %v546 = vld [vmem:[%s543 + $0x10] sm:$0xff]
    %v547 = vld [vmem:[%s543 + $0x18] sm:$0xff]
    %vm550 = vcmask 1041409
    %v551 = vsel %vm550, %v524, %v517
    %v552 = vsel %vm177, %v551, 0
    %554 = vmatprep.subr.mxu0 0.0
    %555 = vmatpush1.msra.mxu0 0.0
    %556 = vmatprep.subr.mxu0 0.0
    %557 = vmatpush1.msra.mxu0 0.0
    %558 = vmatprep.subr.mxu0 0.0
    %559 = vmatpush1.msra.mxu0 0.0
    %560 = vmatprep.subr.mxu0 0.0
    %561 = vmatpush1.msra.mxu0 0.0
    %562 = vmatprep.subr.mxu0 0.0
    %563 = vmatpush1.msra.mxu0 0.0
    %564 = vmatprep.subr.mxu0 0.0
    %565 = vmatpush1.msra.mxu0 0.0
    %566 = vmatprep.subr.mxu0 0.0
    %567 = vmatpush1.msra.mxu0 0.0
    %568 = vmatprep.subr.mxu0 0.0
    %569 = vmatpush1.msra.mxu0 0.0
    %570 = vmatprep.subr.mxu0 0.0
    %571 = vmatpush1.msra.mxu0 0.0
    %572 = vmatprep.subr.mxu0 0.0
    %573 = vmatpush1.msra.mxu0 0.0
    %574 = vmatprep.subr.mxu0 0.0
    %575 = vmatpush1.msra.mxu0 0.0
    %576 = vmatprep.subr.mxu0 0.0
    %577 = vmatpush1.msra.mxu0 0.0
    %578 = vmatprep.subr.mxu0 0.0
    %579 = vmatpush1.msra.mxu0 %v547
    %580 = vmatprep.subr.mxu0 0.0
    %581 = vmatpush1.msra.mxu0 %v546
    %582 = vmatprep.subr.mxu0 0.0
    %583 = vmatpush1.msra.mxu0 %v545
    %584 = vmatprep.subr.mxu0 0.0
    %585 = vmatpush1.msra.mxu0 %v544
    %586 = vmatprep.subr.mxu0 0.0
    %587 = vmatpush2.msra.mxu0 0.0
    %588 = vmatprep.subr.mxu0 0.0
    %589 = vmatpush2.msra.mxu0 0.0
    %590 = vmatprep.subr.mxu0 0.0
    %591 = vmatpush2.msra.mxu0 0.0
    %592 = vmatprep.subr.mxu0 0.0
    %593 = vmatpush2.msra.mxu0 0.0
    %594 = vmatprep.subr.mxu0 0.0
    %595 = vmatpush2.msra.mxu0 0.0
    %596 = vmatprep.subr.mxu0 0.0
    %597 = vmatpush2.msra.mxu0 0.0
    %598 = vmatprep.subr.mxu0 0.0
    %599 = vmatpush2.msra.mxu0 0.0
    %600 = vmatprep.subr.mxu0 0.0
    %601 = vmatpush2.msra.mxu0 0.0
    %602 = vmatprep.subr.mxu0 0.0
    %603 = vmatpush2.msra.mxu0 0.0
    %604 = vmatprep.subr.mxu0 0.0
    %605 = vmatpush2.msra.mxu0 0.0
    %606 = vmatprep.subr.mxu0 0.0
    %607 = vmatpush2.msra.mxu0 0.0
    %608 = vmatprep.subr.mxu0 0.0
    %609 = vmatpush2.msra.mxu0 0.0
    %610 = vmatprep.subr.mxu0 0.0
    %611 = vmatpush2.msra.mxu0 0.0
    %612 = vmatprep.subr.mxu0 0.0
    %613 = vmatpush2.msra.mxu0 0.0
    %614 = vmatprep.subr.mxu0 0.0
    %615 = vmatpush2.msra.mxu0 0.0
    %616 = vmatprep.subr.mxu0 0.0
    %617 = vmatpush2.msra.mxu0 0.0
    %618 = vmatprep.mubr.f32.mxu0 0.0
    %619 = vmatmul.mubr.f32.gmra.mxu0 %v552
    %v620 = vpop.f32.mrf.mxu0
    %v621 = vadd.f32 0.0, %v620
    %v622 = vpop.f32.mrf.mxu0
    %623 = vdwg.mxu0
    %v626 = vsel %vm550, %v496, %v489
    %v627 = vsel %vm177, %v626, 0
    %629 = vmatprep.subr.mxu0 0.0
    %630 = vmatpush1.msra.mxu0 0.0
    %631 = vmatprep.subr.mxu0 0.0
    %632 = vmatpush1.msra.mxu0 0.0
    %633 = vmatprep.subr.mxu0 0.0
    %634 = vmatpush1.msra.mxu0 0.0
    %635 = vmatprep.subr.mxu0 0.0
    %636 = vmatpush1.msra.mxu0 0.0
    %637 = vmatprep.subr.mxu0 0.0
    %638 = vmatpush1.msra.mxu0 0.0
    %639 = vmatprep.subr.mxu0 0.0
    %640 = vmatpush1.msra.mxu0 0.0
    %641 = vmatprep.subr.mxu0 0.0
    %642 = vmatpush1.msra.mxu0 0.0
    %643 = vmatprep.subr.mxu0 0.0
    %644 = vmatpush1.msra.mxu0 0.0
    %645 = vmatprep.subr.mxu0 0.0
    %646 = vmatpush1.msra.mxu0 0.0
    %647 = vmatprep.subr.mxu0 0.0
    %648 = vmatpush1.msra.mxu0 0.0
    %649 = vmatprep.subr.mxu0 0.0
    %650 = vmatpush1.msra.mxu0 0.0
    %651 = vmatprep.subr.mxu0 0.0
    %652 = vmatpush1.msra.mxu0 0.0
    %653 = vmatprep.subr.mxu0 0.0
    %654 = vmatpush1.msra.mxu0 %v542
    %655 = vmatprep.subr.mxu0 0.0
    %656 = vmatpush1.msra.mxu0 %v541
    %657 = vmatprep.subr.mxu0 0.0
    %658 = vmatpush1.msra.mxu0 %v540
    %659 = vmatprep.subr.mxu0 0.0
    %660 = vmatpush1.msra.mxu0 %v539
    %661 = vmatprep.subr.mxu0 0.0
    %662 = vmatpush2.msra.mxu0 0.0
    %663 = vmatprep.subr.mxu0 0.0
    %664 = vmatpush2.msra.mxu0 0.0
    %665 = vmatprep.subr.mxu0 0.0
    %666 = vmatpush2.msra.mxu0 0.0
    %667 = vmatprep.subr.mxu0 0.0
    %668 = vmatpush2.msra.mxu0 0.0
    %669 = vmatprep.subr.mxu0 0.0
    %670 = vmatpush2.msra.mxu0 0.0
    %671 = vmatprep.subr.mxu0 0.0
    %672 = vmatpush2.msra.mxu0 0.0
    %673 = vmatprep.subr.mxu0 0.0
    %674 = vmatpush2.msra.mxu0 0.0
    %675 = vmatprep.subr.mxu0 0.0
    %676 = vmatpush2.msra.mxu0 0.0
    %677 = vmatprep.subr.mxu0 0.0
    %678 = vmatpush2.msra.mxu0 0.0
    %679 = vmatprep.subr.mxu0 0.0
    %680 = vmatpush2.msra.mxu0 0.0
    %681 = vmatprep.subr.mxu0 0.0
    %682 = vmatpush2.msra.mxu0 0.0
    %683 = vmatprep.subr.mxu0 0.0
    %684 = vmatpush2.msra.mxu0 0.0
    %685 = vmatprep.subr.mxu0 0.0
    %686 = vmatpush2.msra.mxu0 0.0
    %687 = vmatprep.subr.mxu0 0.0
    %688 = vmatpush2.msra.mxu0 0.0
    %689 = vmatprep.subr.mxu0 0.0
    %690 = vmatpush2.msra.mxu0 0.0
    %691 = vmatprep.subr.mxu0 0.0
    %692 = vmatpush2.msra.mxu0 0.0
    %693 = vmatprep.mubr.f32.mxu0 0.0
    %694 = vmatmul.mubr.f32.gmra.mxu0 %v627
    %v695 = vpop.f32.mrf.mxu0
    %v696 = vadd.f32 %v621, %v695
    %v697 = vpop.f32.mrf.mxu0
    %698 = vdwg.mxu0
    %s699 = scalar_lea.vmem %s5, 64
    %v700 = vld [vmem:[%s699] sm:$0xff]
    %v701 = vld [vmem:[%s699 + $0x8] sm:$0xff]
    %v702 = vld [vmem:[%s699 + $0x10] sm:$0xff]
    %v703 = vld [vmem:[%s699 + $0x18] sm:$0xff]
    %v706 = vsel %vm550, %v510, %v503
    %v707 = vsel %vm177, %v706, 0
    %709 = vmatprep.subr.mxu0 0.0
    %710 = vmatpush1.msra.mxu0 0.0
    %711 = vmatprep.subr.mxu0 0.0
    %712 = vmatpush1.msra.mxu0 0.0
    %713 = vmatprep.subr.mxu0 0.0
    %714 = vmatpush1.msra.mxu0 0.0
    %715 = vmatprep.subr.mxu0 0.0
    %716 = vmatpush1.msra.mxu0 0.0
    %717 = vmatprep.subr.mxu0 0.0
    %718 = vmatpush1.msra.mxu0 0.0
    %719 = vmatprep.subr.mxu0 0.0
    %720 = vmatpush1.msra.mxu0 0.0
    %721 = vmatprep.subr.mxu0 0.0
    %722 = vmatpush1.msra.mxu0 0.0
    %723 = vmatprep.subr.mxu0 0.0
    %724 = vmatpush1.msra.mxu0 0.0
    %725 = vmatprep.subr.mxu0 0.0
    %726 = vmatpush1.msra.mxu0 0.0
    %727 = vmatprep.subr.mxu0 0.0
    %728 = vmatpush1.msra.mxu0 0.0
    %729 = vmatprep.subr.mxu0 0.0
    %730 = vmatpush1.msra.mxu0 0.0
    %731 = vmatprep.subr.mxu0 0.0
    %732 = vmatpush1.msra.mxu0 0.0
    %733 = vmatprep.subr.mxu0 0.0
    %734 = vmatpush1.msra.mxu0 %v703
    %735 = vmatprep.subr.mxu0 0.0
    %736 = vmatpush1.msra.mxu0 %v702
    %737 = vmatprep.subr.mxu0 0.0
    %738 = vmatpush1.msra.mxu0 %v701
    %739 = vmatprep.subr.mxu0 0.0
    %740 = vmatpush1.msra.mxu0 %v700
    %741 = vmatprep.subr.mxu0 0.0
    %742 = vmatpush2.msra.mxu0 0.0
    %743 = vmatprep.subr.mxu0 0.0
    %744 = vmatpush2.msra.mxu0 0.0
    %745 = vmatprep.subr.mxu0 0.0
    %746 = vmatpush2.msra.mxu0 0.0
    %747 = vmatprep.subr.mxu0 0.0
    %748 = vmatpush2.msra.mxu0 0.0
    %749 = vmatprep.subr.mxu0 0.0
    %750 = vmatpush2.msra.mxu0 0.0
    %751 = vmatprep.subr.mxu0 0.0
    %752 = vmatpush2.msra.mxu0 0.0
    %753 = vmatprep.subr.mxu0 0.0
    %754 = vmatpush2.msra.mxu0 0.0
    %755 = vmatprep.subr.mxu0 0.0
    %756 = vmatpush2.msra.mxu0 0.0
    %757 = vmatprep.subr.mxu0 0.0
    %758 = vmatpush2.msra.mxu0 0.0
    %759 = vmatprep.subr.mxu0 0.0
    %760 = vmatpush2.msra.mxu0 0.0
    %761 = vmatprep.subr.mxu0 0.0
    %762 = vmatpush2.msra.mxu0 0.0
    %763 = vmatprep.subr.mxu0 0.0
    %764 = vmatpush2.msra.mxu0 0.0
    %765 = vmatprep.subr.mxu0 0.0
    %766 = vmatpush2.msra.mxu0 0.0
    %767 = vmatprep.subr.mxu0 0.0
    %768 = vmatpush2.msra.mxu0 0.0
    %769 = vmatprep.subr.mxu0 0.0
    %770 = vmatpush2.msra.mxu0 0.0
    %771 = vmatprep.subr.mxu0 0.0
    %772 = vmatpush2.msra.mxu0 0.0
    %773 = vmatprep.mubr.f32.mxu0 0.0
    %774 = vmatmul.mubr.f32.gmra.mxu0 %v707
    %v775 = vpop.f32.mrf.mxu0
    %v776 = vadd.f32 0.0, %v775
    %v777 = vpop.f32.mrf.mxu0
    %778 = vdwg.mxu0
    %v779 = vadd.f32 %v696, %v776
    %s780 = scalar_lea.vmem %s5, 96
    %v781 = vld [vmem:[%s780] sm:$0xff]
    %v782 = vld [vmem:[%s780 + $0x8] sm:$0xff]
    %v783 = vld [vmem:[%s780 + $0x10] sm:$0xff]
    %v784 = vld [vmem:[%s780 + $0x18] sm:$0xff]
    %v787 = vsel %vm550, %v538, %v531
    %v788 = vsel %vm177, %v787, 0
    %790 = vmatprep.subr.mxu0 0.0
    %791 = vmatpush1.msra.mxu0 0.0
    %792 = vmatprep.subr.mxu0 0.0
    %793 = vmatpush1.msra.mxu0 0.0
    %794 = vmatprep.subr.mxu0 0.0
    %795 = vmatpush1.msra.mxu0 0.0
    %796 = vmatprep.subr.mxu0 0.0
    %797 = vmatpush1.msra.mxu0 0.0
    %798 = vmatprep.subr.mxu0 0.0
    %799 = vmatpush1.msra.mxu0 0.0
    %800 = vmatprep.subr.mxu0 0.0
    %801 = vmatpush1.msra.mxu0 0.0
    %802 = vmatprep.subr.mxu0 0.0
    %803 = vmatpush1.msra.mxu0 0.0
    %804 = vmatprep.subr.mxu0 0.0
    %805 = vmatpush1.msra.mxu0 0.0
    %806 = vmatprep.subr.mxu0 0.0
    %807 = vmatpush1.msra.mxu0 0.0
    %808 = vmatprep.subr.mxu0 0.0
    %809 = vmatpush1.msra.mxu0 0.0
    %810 = vmatprep.subr.mxu0 0.0
    %811 = vmatpush1.msra.mxu0 0.0
    %812 = vmatprep.subr.mxu0 0.0
    %813 = vmatpush1.msra.mxu0 0.0
    %814 = vmatprep.subr.mxu0 0.0
    %815 = vmatpush1.msra.mxu0 %v784
    %816 = vmatprep.subr.mxu0 0.0
    %817 = vmatpush1.msra.mxu0 %v783
    %818 = vmatprep.subr.mxu0 0.0
    %819 = vmatpush1.msra.mxu0 %v782
    %820 = vmatprep.subr.mxu0 0.0
    %821 = vmatpush1.msra.mxu0 %v781
    %822 = vmatprep.subr.mxu0 0.0
    %823 = vmatpush2.msra.mxu0 0.0
    %824 = vmatprep.subr.mxu0 0.0
    %825 = vmatpush2.msra.mxu0 0.0
    %826 = vmatprep.subr.mxu0 0.0
    %827 = vmatpush2.msra.mxu0 0.0
    %828 = vmatprep.subr.mxu0 0.0
    %829 = vmatpush2.msra.mxu0 0.0
    %830 = vmatprep.subr.mxu0 0.0
    %831 = vmatpush2.msra.mxu0 0.0
    %832 = vmatprep.subr.mxu0 0.0
    %833 = vmatpush2.msra.mxu0 0.0
    %834 = vmatprep.subr.mxu0 0.0
    %835 = vmatpush2.msra.mxu0 0.0
    %836 = vmatprep.subr.mxu0 0.0
    %837 = vmatpush2.msra.mxu0 0.0
    %838 = vmatprep.subr.mxu0 0.0
    %839 = vmatpush2.msra.mxu0 0.0
    %840 = vmatprep.subr.mxu0 0.0
    %841 = vmatpush2.msra.mxu0 0.0
    %842 = vmatprep.subr.mxu0 0.0
    %843 = vmatpush2.msra.mxu0 0.0
    %844 = vmatprep.subr.mxu0 0.0
    %845 = vmatpush2.msra.mxu0 0.0
    %846 = vmatprep.subr.mxu0 0.0
    %847 = vmatpush2.msra.mxu0 0.0
    %848 = vmatprep.subr.mxu0 0.0
    %849 = vmatpush2.msra.mxu0 0.0
    %850 = vmatprep.subr.mxu0 0.0
    %851 = vmatpush2.msra.mxu0 0.0
    %852 = vmatprep.subr.mxu0 0.0
    %853 = vmatpush2.msra.mxu0 0.0
    %854 = vmatprep.mubr.f32.mxu0 0.0
    %855 = vmatmul.mubr.f32.gmra.mxu0 %v788
    %v856 = vpop.f32.mrf.mxu0
    %v857 = vadd.f32 0.0, %v856
    %v858 = vpop.f32.mrf.mxu0
    %859 = vdwg.mxu0
    %v860 = vadd.f32 %v779, %v857
    %v861 = vsub.f32 %v489, %v503
    %v862 = vsub.f32 %v496, %v510
    %v863 = vand.u32 2147483647, %v861
    %v864 = vand.u32 2147483647, %v862
    %s865 = scalar_lea.vmem %s5, 128
    %v866 = vld [vmem:[%s865] sm:$0xff]
    %v867 = vld [vmem:[%s865 + $0x8] sm:$0xff]
    %v868 = vld [vmem:[%s865 + $0x10] sm:$0xff]
    %v869 = vld [vmem:[%s865 + $0x18] sm:$0xff]
    %v872 = vsel %vm550, %v864, %v863
    %v873 = vsel %vm177, %v872, 0
    %875 = vmatprep.subr.mxu0 0.0
    %876 = vmatpush1.msra.mxu0 0.0
    %877 = vmatprep.subr.mxu0 0.0
    %878 = vmatpush1.msra.mxu0 0.0
    %879 = vmatprep.subr.mxu0 0.0
    %880 = vmatpush1.msra.mxu0 0.0
    %881 = vmatprep.subr.mxu0 0.0
    %882 = vmatpush1.msra.mxu0 0.0
    %883 = vmatprep.subr.mxu0 0.0
    %884 = vmatpush1.msra.mxu0 0.0
    %885 = vmatprep.subr.mxu0 0.0
    %886 = vmatpush1.msra.mxu0 0.0
    %887 = vmatprep.subr.mxu0 0.0
    %888 = vmatpush1.msra.mxu0 0.0
    %889 = vmatprep.subr.mxu0 0.0
    %890 = vmatpush1.msra.mxu0 0.0
    %891 = vmatprep.subr.mxu0 0.0
    %892 = vmatpush1.msra.mxu0 0.0
    %893 = vmatprep.subr.mxu0 0.0
    %894 = vmatpush1.msra.mxu0 0.0
    %895 = vmatprep.subr.mxu0 0.0
    %896 = vmatpush1.msra.mxu0 0.0
    %897 = vmatprep.subr.mxu0 0.0
    %898 = vmatpush1.msra.mxu0 0.0
    %899 = vmatprep.subr.mxu0 0.0
    %900 = vmatpush1.msra.mxu0 %v869
    %901 = vmatprep.subr.mxu0 0.0
    %902 = vmatpush1.msra.mxu0 %v868
    %903 = vmatprep.subr.mxu0 0.0
    %904 = vmatpush1.msra.mxu0 %v867
    %905 = vmatprep.subr.mxu0 0.0
    %906 = vmatpush1.msra.mxu0 %v866
    %907 = vmatprep.subr.mxu0 0.0
    %908 = vmatpush2.msra.mxu0 0.0
    %909 = vmatprep.subr.mxu0 0.0
    %910 = vmatpush2.msra.mxu0 0.0
    %911 = vmatprep.subr.mxu0 0.0
    %912 = vmatpush2.msra.mxu0 0.0
    %913 = vmatprep.subr.mxu0 0.0
    %914 = vmatpush2.msra.mxu0 0.0
    %915 = vmatprep.subr.mxu0 0.0
    %916 = vmatpush2.msra.mxu0 0.0
    %917 = vmatprep.subr.mxu0 0.0
    %918 = vmatpush2.msra.mxu0 0.0
    %919 = vmatprep.subr.mxu0 0.0
    %920 = vmatpush2.msra.mxu0 0.0
    %921 = vmatprep.subr.mxu0 0.0
    %922 = vmatpush2.msra.mxu0 0.0
    %923 = vmatprep.subr.mxu0 0.0
    %924 = vmatpush2.msra.mxu0 0.0
    %925 = vmatprep.subr.mxu0 0.0
    %926 = vmatpush2.msra.mxu0 0.0
    %927 = vmatprep.subr.mxu0 0.0
    %928 = vmatpush2.msra.mxu0 0.0
    %929 = vmatprep.subr.mxu0 0.0
    %930 = vmatpush2.msra.mxu0 0.0
    %931 = vmatprep.subr.mxu0 0.0
    %932 = vmatpush2.msra.mxu0 0.0
    %933 = vmatprep.subr.mxu0 0.0
    %934 = vmatpush2.msra.mxu0 0.0
    %935 = vmatprep.subr.mxu0 0.0
    %936 = vmatpush2.msra.mxu0 0.0
    %937 = vmatprep.subr.mxu0 0.0
    %938 = vmatpush2.msra.mxu0 0.0
    %939 = vmatprep.mubr.f32.mxu0 0.0
    %940 = vmatmul.mubr.f32.gmra.mxu0 %v873
    %v941 = vpop.f32.mrf.mxu0
    %v942 = vadd.f32 0.0, %v941
    %v943 = vpop.f32.mrf.mxu0
    %944 = vdwg.mxu0
    %v945 = vadd.f32 %v860, %v942
    %v946 = vsub.f32 %v517, %v531
    %v947 = vsub.f32 %v524, %v538
    %v948 = vand.u32 2147483647, %v946
    %v949 = vand.u32 2147483647, %v947
    %s950 = scalar_lea.vmem %s5, 160
    %v951 = vld [vmem:[%s950] sm:$0xff]
    %v952 = vld [vmem:[%s950 + $0x8] sm:$0xff]
    %v953 = vld [vmem:[%s950 + $0x10] sm:$0xff]
    %v954 = vld [vmem:[%s950 + $0x18] sm:$0xff]
    %v957 = vsel %vm550, %v949, %v948
    %v958 = vsel %vm177, %v957, 0
    %960 = vmatprep.subr.mxu0 0.0
    %961 = vmatpush1.msra.mxu0 0.0
    %962 = vmatprep.subr.mxu0 0.0
    %963 = vmatpush1.msra.mxu0 0.0
    %964 = vmatprep.subr.mxu0 0.0
    %965 = vmatpush1.msra.mxu0 0.0
    %966 = vmatprep.subr.mxu0 0.0
    %967 = vmatpush1.msra.mxu0 0.0
    %968 = vmatprep.subr.mxu0 0.0
    %969 = vmatpush1.msra.mxu0 0.0
    %970 = vmatprep.subr.mxu0 0.0
    %971 = vmatpush1.msra.mxu0 0.0
    %972 = vmatprep.subr.mxu0 0.0
    %973 = vmatpush1.msra.mxu0 0.0
    %974 = vmatprep.subr.mxu0 0.0
    %975 = vmatpush1.msra.mxu0 0.0
    %976 = vmatprep.subr.mxu0 0.0
    %977 = vmatpush1.msra.mxu0 0.0
    %978 = vmatprep.subr.mxu0 0.0
    %979 = vmatpush1.msra.mxu0 0.0
    %980 = vmatprep.subr.mxu0 0.0
    %981 = vmatpush1.msra.mxu0 0.0
    %982 = vmatprep.subr.mxu0 0.0
    %983 = vmatpush1.msra.mxu0 0.0
    %984 = vmatprep.subr.mxu0 0.0
    %985 = vmatpush1.msra.mxu0 %v954
    %986 = vmatprep.subr.mxu0 0.0
    %987 = vmatpush1.msra.mxu0 %v953
    %988 = vmatprep.subr.mxu0 0.0
    %989 = vmatpush1.msra.mxu0 %v952
    %990 = vmatprep.subr.mxu0 0.0
    %991 = vmatpush1.msra.mxu0 %v951
    %992 = vmatprep.subr.mxu0 0.0
    %993 = vmatpush2.msra.mxu0 0.0
    %994 = vmatprep.subr.mxu0 0.0
    %995 = vmatpush2.msra.mxu0 0.0
    %996 = vmatprep.subr.mxu0 0.0
    %997 = vmatpush2.msra.mxu0 0.0
    %998 = vmatprep.subr.mxu0 0.0
    %999 = vmatpush2.msra.mxu0 0.0
    %1000 = vmatprep.subr.mxu0 0.0
    %1001 = vmatpush2.msra.mxu0 0.0
    %1002 = vmatprep.subr.mxu0 0.0
    %1003 = vmatpush2.msra.mxu0 0.0
    %1004 = vmatprep.subr.mxu0 0.0
    %1005 = vmatpush2.msra.mxu0 0.0
    %1006 = vmatprep.subr.mxu0 0.0
    %1007 = vmatpush2.msra.mxu0 0.0
    %1008 = vmatprep.subr.mxu0 0.0
    %1009 = vmatpush2.msra.mxu0 0.0
    %1010 = vmatprep.subr.mxu0 0.0
    %1011 = vmatpush2.msra.mxu0 0.0
    %1012 = vmatprep.subr.mxu0 0.0
    %1013 = vmatpush2.msra.mxu0 0.0
    %1014 = vmatprep.subr.mxu0 0.0
    %1015 = vmatpush2.msra.mxu0 0.0
    %1016 = vmatprep.subr.mxu0 0.0
    %1017 = vmatpush2.msra.mxu0 0.0
    %1018 = vmatprep.subr.mxu0 0.0
    %1019 = vmatpush2.msra.mxu0 0.0
    %1020 = vmatprep.subr.mxu0 0.0
    %1021 = vmatpush2.msra.mxu0 0.0
    %1022 = vmatprep.subr.mxu0 0.0
    %1023 = vmatpush2.msra.mxu0 0.0
    %1024 = vmatprep.mubr.f32.mxu0 0.0
    %1025 = vmatmul.mubr.f32.gmra.mxu0 %v958
    %v1026 = vpop.f32.mrf.mxu0
    %v1027 = vadd.f32 0.0, %v1026
    %v1028 = vpop.f32.mrf.mxu0
    %1029 = vdwg.mxu0
    %v1030 = vadd.f32 %v945, %v1027
    %v1031 = vmul.f32 %v489, %v503
    %v1032 = vmul.f32 %v496, %v510
    %s1033 = scalar_lea.vmem %s5, 192
    %v1034 = vld [vmem:[%s1033] sm:$0xff]
    %v1035 = vld [vmem:[%s1033 + $0x8] sm:$0xff]
    %v1036 = vld [vmem:[%s1033 + $0x10] sm:$0xff]
    %v1037 = vld [vmem:[%s1033 + $0x18] sm:$0xff]
    %v1040 = vsel %vm550, %v1032, %v1031
    %v1041 = vsel %vm177, %v1040, 0
    %1043 = vmatprep.subr.mxu0 0.0
    %1044 = vmatpush1.msra.mxu0 0.0
    %1045 = vmatprep.subr.mxu0 0.0
    %1046 = vmatpush1.msra.mxu0 0.0
    %1047 = vmatprep.subr.mxu0 0.0
    %1048 = vmatpush1.msra.mxu0 0.0
    %1049 = vmatprep.subr.mxu0 0.0
    %1050 = vmatpush1.msra.mxu0 0.0
    %1051 = vmatprep.subr.mxu0 0.0
    %1052 = vmatpush1.msra.mxu0 0.0
    %1053 = vmatprep.subr.mxu0 0.0
    %1054 = vmatpush1.msra.mxu0 0.0
    %1055 = vmatprep.subr.mxu0 0.0
    %1056 = vmatpush1.msra.mxu0 0.0
    %1057 = vmatprep.subr.mxu0 0.0
    %1058 = vmatpush1.msra.mxu0 0.0
    %1059 = vmatprep.subr.mxu0 0.0
    %1060 = vmatpush1.msra.mxu0 0.0
    %1061 = vmatprep.subr.mxu0 0.0
    %1062 = vmatpush1.msra.mxu0 0.0
    %1063 = vmatprep.subr.mxu0 0.0
    %1064 = vmatpush1.msra.mxu0 0.0
    %1065 = vmatprep.subr.mxu0 0.0
    %1066 = vmatpush1.msra.mxu0 0.0
    %1067 = vmatprep.subr.mxu0 0.0
    %1068 = vmatpush1.msra.mxu0 %v1037
    %1069 = vmatprep.subr.mxu0 0.0
    %1070 = vmatpush1.msra.mxu0 %v1036
    %1071 = vmatprep.subr.mxu0 0.0
    %1072 = vmatpush1.msra.mxu0 %v1035
    %1073 = vmatprep.subr.mxu0 0.0
    %1074 = vmatpush1.msra.mxu0 %v1034
    %1075 = vmatprep.subr.mxu0 0.0
    %1076 = vmatpush2.msra.mxu0 0.0
    %1077 = vmatprep.subr.mxu0 0.0
    %1078 = vmatpush2.msra.mxu0 0.0
    %1079 = vmatprep.subr.mxu0 0.0
    %1080 = vmatpush2.msra.mxu0 0.0
    %1081 = vmatprep.subr.mxu0 0.0
    %1082 = vmatpush2.msra.mxu0 0.0
    %1083 = vmatprep.subr.mxu0 0.0
    %1084 = vmatpush2.msra.mxu0 0.0
    %1085 = vmatprep.subr.mxu0 0.0
    %1086 = vmatpush2.msra.mxu0 0.0
    %1087 = vmatprep.subr.mxu0 0.0
    %1088 = vmatpush2.msra.mxu0 0.0
    %1089 = vmatprep.subr.mxu0 0.0
    %1090 = vmatpush2.msra.mxu0 0.0
    %1091 = vmatprep.subr.mxu0 0.0
    %1092 = vmatpush2.msra.mxu0 0.0
    %1093 = vmatprep.subr.mxu0 0.0
    %1094 = vmatpush2.msra.mxu0 0.0
    %1095 = vmatprep.subr.mxu0 0.0
    %1096 = vmatpush2.msra.mxu0 0.0
    %1097 = vmatprep.subr.mxu0 0.0
    %1098 = vmatpush2.msra.mxu0 0.0
    %1099 = vmatprep.subr.mxu0 0.0
    %1100 = vmatpush2.msra.mxu0 0.0
    %1101 = vmatprep.subr.mxu0 0.0
    %1102 = vmatpush2.msra.mxu0 0.0
    %1103 = vmatprep.subr.mxu0 0.0
    %1104 = vmatpush2.msra.mxu0 0.0
    %1105 = vmatprep.subr.mxu0 0.0
    %1106 = vmatpush2.msra.mxu0 0.0
    %1107 = vmatprep.mubr.f32.mxu0 0.0
    %1108 = vmatmul.mubr.f32.gmra.mxu0 %v1041
    %v1109 = vpop.f32.mrf.mxu0
    %v1110 = vadd.f32 0.0, %v1109
    %v1111 = vpop.f32.mrf.mxu0
    %1112 = vdwg.mxu0
    %v1113 = vadd.f32 %v1030, %v1110
    %v1114 = vmul.f32 %v517, %v531
    %v1115 = vmul.f32 %v524, %v538
    %s1116 = scalar_lea.vmem %s5, 224
    %v1117 = vld [vmem:[%s1116] sm:$0xff]
    %v1118 = vld [vmem:[%s1116 + $0x8] sm:$0xff]
    %v1119 = vld [vmem:[%s1116 + $0x10] sm:$0xff]
    %v1120 = vld [vmem:[%s1116 + $0x18] sm:$0xff]
    %v1123 = vsel %vm550, %v1115, %v1114
    %v1124 = vsel %vm177, %v1123, 0
    %1126 = vmatprep.subr.mxu0 0.0
    %1127 = vmatpush1.msra.mxu0 0.0
    %1128 = vmatprep.subr.mxu0 0.0
    %1129 = vmatpush1.msra.mxu0 0.0
    %1130 = vmatprep.subr.mxu0 0.0
    %1131 = vmatpush1.msra.mxu0 0.0
    %1132 = vmatprep.subr.mxu0 0.0
    %1133 = vmatpush1.msra.mxu0 0.0
    %1134 = vmatprep.subr.mxu0 0.0
    %1135 = vmatpush1.msra.mxu0 0.0
    %1136 = vmatprep.subr.mxu0 0.0
    %1137 = vmatpush1.msra.mxu0 0.0
    %1138 = vmatprep.subr.mxu0 0.0
    %1139 = vmatpush1.msra.mxu0 0.0
    %1140 = vmatprep.subr.mxu0 0.0
    %1141 = vmatpush1.msra.mxu0 0.0
    %1142 = vmatprep.subr.mxu0 0.0
    %1143 = vmatpush1.msra.mxu0 0.0
    %1144 = vmatprep.subr.mxu0 0.0
    %1145 = vmatpush1.msra.mxu0 0.0
    %1146 = vmatprep.subr.mxu0 0.0
    %1147 = vmatpush1.msra.mxu0 0.0
    %1148 = vmatprep.subr.mxu0 0.0
    %1149 = vmatpush1.msra.mxu0 0.0
    %1150 = vmatprep.subr.mxu0 0.0
    %1151 = vmatpush1.msra.mxu0 %v1120
    %1152 = vmatprep.subr.mxu0 0.0
    %1153 = vmatpush1.msra.mxu0 %v1119
    %1154 = vmatprep.subr.mxu0 0.0
    %1155 = vmatpush1.msra.mxu0 %v1118
    %1156 = vmatprep.subr.mxu0 0.0
    %1157 = vmatpush1.msra.mxu0 %v1117
    %1158 = vmatprep.subr.mxu0 0.0
    %1159 = vmatpush2.msra.mxu0 0.0
    %1160 = vmatprep.subr.mxu0 0.0
    %1161 = vmatpush2.msra.mxu0 0.0
    %1162 = vmatprep.subr.mxu0 0.0
    %1163 = vmatpush2.msra.mxu0 0.0
    %1164 = vmatprep.subr.mxu0 0.0
    %1165 = vmatpush2.msra.mxu0 0.0
    %1166 = vmatprep.subr.mxu0 0.0
    %1167 = vmatpush2.msra.mxu0 0.0
    %1168 = vmatprep.subr.mxu0 0.0
    %1169 = vmatpush2.msra.mxu0 0.0
    %1170 = vmatprep.subr.mxu0 0.0
    %1171 = vmatpush2.msra.mxu0 0.0
    %1172 = vmatprep.subr.mxu0 0.0
    %1173 = vmatpush2.msra.mxu0 0.0
    %1174 = vmatprep.subr.mxu0 0.0
    %1175 = vmatpush2.msra.mxu0 0.0
    %1176 = vmatprep.subr.mxu0 0.0
    %1177 = vmatpush2.msra.mxu0 0.0
    %1178 = vmatprep.subr.mxu0 0.0
    %1179 = vmatpush2.msra.mxu0 0.0
    %1180 = vmatprep.subr.mxu0 0.0
    %1181 = vmatpush2.msra.mxu0 0.0
    %1182 = vmatprep.subr.mxu0 0.0
    %1183 = vmatpush2.msra.mxu0 0.0
    %1184 = vmatprep.subr.mxu0 0.0
    %1185 = vmatpush2.msra.mxu0 0.0
    %1186 = vmatprep.subr.mxu0 0.0
    %1187 = vmatpush2.msra.mxu0 0.0
    %1188 = vmatprep.subr.mxu0 0.0
    %1189 = vmatpush2.msra.mxu0 0.0
    %1190 = vmatprep.mubr.f32.mxu0 0.0
    %1191 = vmatmul.mubr.f32.gmra.mxu0 %v1124
    %v1192 = vpop.f32.mrf.mxu0
    %v1193 = vadd.f32 0.0, %v1192
    %v1194 = vpop.f32.mrf.mxu0
    %1195 = vdwg.mxu0
    %v1196 = vadd.f32 %v1113, %v1193
    %v1197 = vld [vmem:[%s6] sm:$0x1]
    %v1199 = vlaneseq
    %v1200 = vshrl.u32 %v1199, 7
    %v1201 = vsub.s32 0, %v1200
    %v1202 = vrot.slane %v1197, %v1201
    %v1204 = vadd.f32 %v1196, %v1202
    %v1205 = vmax.f32 %v1204, 0.0
    %v1206 = vld [vmem:[%s7] sm:$0xff]
    %v1207 = vld [vmem:[%s7 + $0x8] sm:$0xff]
    %v1208 = vld [vmem:[%s7 + $0x10] sm:$0xff]
    %v1209 = vld [vmem:[%s7 + $0x18] sm:$0xff]
    %v1210 = vld [vmem:[%s8] sm:$0x1]
    %v1212 = vlaneseq
    %v1213 = vshrl.u32 %v1212, 7
    %v1214 = vsub.s32 0, %v1213
    %v1215 = vrot.slane %v1210, %v1214
    %v1218 = vsel %vm177, %v1205, 0
    %1220 = vmatprep.subr.mxu0 0.0
    %1221 = vmatpush1.msra.mxu0 0.0
    %1222 = vmatprep.subr.mxu0 0.0
    %1223 = vmatpush1.msra.mxu0 0.0
    %1224 = vmatprep.subr.mxu0 0.0
    %1225 = vmatpush1.msra.mxu0 0.0
    %1226 = vmatprep.subr.mxu0 0.0
    %1227 = vmatpush1.msra.mxu0 0.0
    %1228 = vmatprep.subr.mxu0 0.0
    %1229 = vmatpush1.msra.mxu0 0.0
    %1230 = vmatprep.subr.mxu0 0.0
    %1231 = vmatpush1.msra.mxu0 0.0
    %1232 = vmatprep.subr.mxu0 0.0
    %1233 = vmatpush1.msra.mxu0 0.0
    %1234 = vmatprep.subr.mxu0 0.0
    %1235 = vmatpush1.msra.mxu0 0.0
    %1236 = vmatprep.subr.mxu0 0.0
    %1237 = vmatpush1.msra.mxu0 0.0
    %1238 = vmatprep.subr.mxu0 0.0
    %1239 = vmatpush1.msra.mxu0 0.0
    %1240 = vmatprep.subr.mxu0 0.0
    %1241 = vmatpush1.msra.mxu0 0.0
    %1242 = vmatprep.subr.mxu0 0.0
    %1243 = vmatpush1.msra.mxu0 0.0
    %1244 = vmatprep.subr.mxu0 0.0
    %1245 = vmatpush1.msra.mxu0 %v1209
    %1246 = vmatprep.subr.mxu0 0.0
    %1247 = vmatpush1.msra.mxu0 %v1208
    %1248 = vmatprep.subr.mxu0 0.0
    %1249 = vmatpush1.msra.mxu0 %v1207
    %1250 = vmatprep.subr.mxu0 0.0
    %1251 = vmatpush1.msra.mxu0 %v1206
    %1252 = vmatprep.subr.mxu0 0.0
    %1253 = vmatpush2.msra.mxu0 0.0
    %1254 = vmatprep.subr.mxu0 0.0
    %1255 = vmatpush2.msra.mxu0 0.0
    %1256 = vmatprep.subr.mxu0 0.0
    %1257 = vmatpush2.msra.mxu0 0.0
    %1258 = vmatprep.subr.mxu0 0.0
    %1259 = vmatpush2.msra.mxu0 0.0
    %1260 = vmatprep.subr.mxu0 0.0
    %1261 = vmatpush2.msra.mxu0 0.0
    %1262 = vmatprep.subr.mxu0 0.0
    %1263 = vmatpush2.msra.mxu0 0.0
    %1264 = vmatprep.subr.mxu0 0.0
    %1265 = vmatpush2.msra.mxu0 0.0
    %1266 = vmatprep.subr.mxu0 0.0
    %1267 = vmatpush2.msra.mxu0 0.0
    %1268 = vmatprep.subr.mxu0 0.0
    %1269 = vmatpush2.msra.mxu0 0.0
    %1270 = vmatprep.subr.mxu0 0.0
    %1271 = vmatpush2.msra.mxu0 0.0
    %1272 = vmatprep.subr.mxu0 0.0
    %1273 = vmatpush2.msra.mxu0 0.0
    %1274 = vmatprep.subr.mxu0 0.0
    %1275 = vmatpush2.msra.mxu0 0.0
    %1276 = vmatprep.subr.mxu0 0.0
    %1277 = vmatpush2.msra.mxu0 0.0
    %1278 = vmatprep.subr.mxu0 0.0
    %1279 = vmatpush2.msra.mxu0 0.0
    %1280 = vmatprep.subr.mxu0 0.0
    %1281 = vmatpush2.msra.mxu0 0.0
    %1282 = vmatprep.subr.mxu0 0.0
    %1283 = vmatpush2.msra.mxu0 0.0
    %1284 = vmatprep.mubr.f32.mxu0 0.0
    %1285 = vmatmul.mubr.f32.gmra.mxu0 %v1218
    %v1286 = vpop.f32.mrf.mxu0
    %v1287 = vadd.f32 %v1215, %v1286
    %v1288 = vpop.f32.mrf.mxu0
    %1289 = vdwg.mxu0
    %vm1290 = vcmask 17408
    %v1291 = vsel %vm1290, %v1287, -inf
    %1292 = vmax.xlane.f32.xlu0 %v1291
    %v1293 = vpop.xlane.xlu0 %1292
    %v1294 = vsub.f32 %v1287, %v1293
    %v1295 = vmul.f32 %v1294, 1.442695
    %v1296 = vpow.pop %v1295
    %v1297 = vsel %vm1290, %v1296, 0.0
    %1298 = vadd.xlane.f32.xlu0 %v1297
    %v1299 = vpop.xlane.xlu0 %1298
    %v1300 = vlog2.pop %v1299
    %v1301 = vmul.f32 %v1300, 0.6931472
    %v1302 = vsub.f32 %v1294, %v1301
    %1303 = vst.msk [vmem:[#allocation2] sm:$0x3] %vm1290, %v1302
    // Predicated region
    $region38: #{nlinet_forward.1} parent=1 // pred_check
      _
    $region39: #{nlinet_forward.1} parent=1 // pred_check_branch
      %1305 = sbr.rel (0) target = $region41
    $region40: #{nlinet_forward.1} parent=1 // pred_region
      %s1307 = ssub.s32 32, 32
      %1308 = vsyncadd [#allocation3], %s1307
      %s1310 = sshll.u32 [#allocation2], 4
      %s1311 = int_to_ptr.vmem [resolvable:$true] %s1310
      %1313 = dma.vmem_to_hbm [thread:$0]  %s1311, 32, %s9, [#allocation3]
    $region41: #{nlinet_forward.1} parent=1 // pred_fallthru
      _
    // Predicated region
    $region42: #{nlinet_forward.1} parent=1 // pred_check
      _
    $region43: #{nlinet_forward.1} parent=1 // pred_check_branch
      %1315 = sbr.rel (0) target = $region45
    $region44: #{nlinet_forward.1} parent=1 // pred_region
      %1316 = dma.done [#allocation3], 32
    $region45: #{nlinet_forward.1} parent=1 // pred_fallthru
      _
    %1317 = vsyncpa [#allocation3], 1

</llo_original>
